<compile_context>
chip_gen: v6e
topology: v6e:2x2x1
jax: 0.10.0
libtpu: 0.0.40
codegen_flags: <defaults>
</compile_context>

<pallas_src>
import functools
import math

import jax
import jax.numpy as jnp
from jax.experimental import pallas as pl
from jax.experimental.pallas import tpu as pltpu

_SQRT_2_OVER_PI = math.sqrt(2.0 / math.pi)


def _gelu(x):
    # tanh-approximation GELU (f32 on the VPU/EUP path).
    return 0.5 * x * (1.0 + jnp.tanh(_SQRT_2_OVER_PI * (x + 0.044715 * x * x * x)))


def _decoder_kernel(inp_ref, vr_ref, wu_ref, bu_ref, w1_ref, b1_ref, out_ref,
                    acc_ref, *, tb, v, v_chunk, flat_out):
    k = pl.program_id(1)

    @pl.when(k == 0)
    def _():
        acc_ref[...] = jnp.zeros_like(acc_ref)

    # Stream one K-tile of the l1 projection into the f32 accumulator (MXU).
    acc_ref[...] += jnp.dot(vr_ref[...], w1_ref[...],
                            preferred_element_type=jnp.float32)

    @pl.when(k == pl.num_programs(1) - 1)
    def _():
        # Utterance projection; inp / Wu blocks are resident across the k axis,
        # so this runs once per batch tile.
        h = _gelu(jnp.dot(inp_ref[...], wu_ref[...],
                          preferred_element_type=jnp.float32)
                  + bu_ref[...])                                     # (TB, H) f32
        vproj = _gelu(acc_ref[...] + b1_ref[...])                    # (TB*V, H) f32

        hdim = vproj.shape[-1]
        # Regroup rows per batch element.  TODO(synk): this reshape is not a
        # view and may materialize a VMEM copy when V is not a sublane multiple.
        vproj3 = vproj.reshape(tb, v, hdim)                          # (TB, V, H)

        # score[b, v] = sum_h h[b, h] * vproj[b, v, h].
        # Chunk over V so the broadcast temp is bounded at (TB, v_chunk, H)
        # (VPU multiply + XLU lane reduce; no transpose, no M=1 matmuls).
        chunks = []
        for v0 in range(0, v, v_chunk):
            vc = min(v_chunk, v - v0)
            chunks.append(jnp.sum(h[:, None, :] * vproj3[:, v0:v0 + vc, :],
                                  axis=-1))                          # (TB, vc)
        score = chunks[0] if len(chunks) == 1 else jnp.concatenate(chunks, axis=-1)

        if flat_out:
            # Lane-dense store: one (1, TB*V) slab instead of a (TB, V<128)
            # block of masked partial stores.
            out_ref[...] = score.reshape(1, tb * v).astype(out_ref.dtype)
        else:
            out_ref[...] = score.astype(out_ref.dtype)


def _vmem_capacity_bytes():
    try:
        return int(pltpu.get_tpu_info().vmem_capacity_bytes)
    except Exception:
        return 64 << 20  # conservative: v7x per-TensorCore VMEM


def _pick_k_tile(h):
    # Stream W1 along its K (=H) axis only when it is large enough to matter.
    if h <= 512:
        return h
    for tk in (512, 256, 128):
        if h % tk == 0:
            return tk
    return h


def _estimate_vmem_bytes(tb, tk, d, h, v, itemsize, single_buffer_weights):
    wbuf = 1 if single_buffer_weights else 2
    kbuf = wbuf if tk == h else 2        # streamed W1 keeps double-buffering
    b = 0
    b += 2 * tb * d * itemsize           # inp block (double-buffered)
    b += 2 * tb * v * tk * itemsize      # value_repn block (double-buffered)
    b += wbuf * d * h * itemsize         # Wu (resident)
    b += kbuf * tk * h * itemsize        # W1 tile
    b += wbuf * 2 * h * 4                # biases (f32)
    b += tb * v * h * 4                  # f32 accumulator scratch
    b += 2 * tb * v * 4                  # output block
    return b


def _pick_batch_tile(batch, fits):
    # Prefer tiles giving >= 2 "parallel" grid steps (keeps both v7x TCs busy),
    # largest VMEM-fitting tile first; fall back to the whole batch as one
    # full-dim block, then to the smallest divisor if even that overshoots.
    cands = [t for t in (1024, 512, 256, 128, 64, 32, 16, 8)
             if batch % t == 0 and t < batch]
    for tb in cands:
        if fits(tb):
            return tb
    if fits(batch) or not cands:
        return batch
    return cands[-1]


def _maybe_buffered_spec(shape, index_map, mode):
    # Only pass pipeline_mode when requested, so the safe fallback config uses
    # the plain BlockSpec API.
    if mode is None:
        return pl.BlockSpec(shape, index_map)
    return pl.BlockSpec(shape, index_map, pipeline_mode=mode)


def categorical_decoder_forward(inp, value_repn, params, *, compute_dtype=None,
                                flat_out=True, single_buffer_weights=True):
    B, D = inp.shape
    Bv, V, H = value_repn.shape
    assert Bv == B

    if compute_dtype is None:
        # bf16 MXU operands only at production widths; toy widths stay f32.
        compute_dtype = jnp.bfloat16 if H >= 256 else jnp.float32
    itemsize = jnp.dtype(compute_dtype).itemsize

    wu = params["wu"].astype(compute_dtype)               # (D, H) == linear_utterance.weight.T
    w1 = params["w1"].astype(compute_dtype)               # (H, H) == l1.weight.T
    bu = params["bu"].reshape(1, H).astype(jnp.float32)   # bias add / GELU stay f32
    b1 = params["b1"].reshape(1, H).astype(jnp.float32)
    x = inp.astype(compute_dtype)
    # Flatten (B, V, H) -> (B*V, H): the l1 projection becomes one 2-D matmul,
    # and at production H the cast makes HBM traffic for value_repn bf16.
    vr2 = value_repn.reshape(B * V, H).astype(compute_dtype)

    TK = _pick_k_tile(H)
    cap = _vmem_capacity_bytes()
    budget = int(cap * 0.8)              # headroom for compiler-internal scratch

    def fits(tb):
        return _estimate_vmem_bytes(tb, TK, D, H, V, itemsize,
                                    single_buffer_weights) <= budget

    TB = _pick_batch_tile(B, fits)
    n_k = H // TK
    est = _estimate_vmem_bytes(TB, TK, D, H, V, itemsize, single_buffer_weights)
    vmem_limit = int(min(cap, max(32 << 20, int(est * 1.25) + (4 << 20))))

    # Chunk the score reduce so the (TB, v_chunk, H) f32 temp stays ~<= 4 MiB.
    v_chunk = int(max(1, min(V, (4 << 20) // max(1, TB * H * 4))))

    resident = pl.Buffered(1) if single_buffer_weights else None
    w1_mode = resident if n_k == 1 else None   # streamed W1 keeps default 2 buffers

    kernel = functools.partial(_decoder_kernel, tb=TB, v=V, v_chunk=v_chunk,
                               flat_out=flat_out)

    if flat_out:
        out_shape = jax.ShapeDtypeStruct((B // TB, TB * V), jnp.float32)
        out_spec = pl.BlockSpec((1, TB * V), lambda b, k: (b, 0))
    else:
        out_shape = jax.ShapeDtypeStruct((B, V), jnp.float32)
        out_spec = pl.BlockSpec((TB, V), lambda b, k: (b, 0))

    out = pl.pallas_call(
        kernel,
        out_shape=out_shape,
        grid=(B // TB, n_k),
        in_specs=[
            pl.BlockSpec((TB, D), lambda b, k: (b, 0)),                         # inp (k-resident)
            pl.BlockSpec((TB * V, TK), lambda b, k: (b, k)),                    # value_repn K-tile
            _maybe_buffered_spec((D, H), lambda b, k: (0, 0), resident),        # Wu^T
            _maybe_buffered_spec((1, H), lambda b, k: (0, 0), resident),        # bu
            _maybe_buffered_spec((TK, H), lambda b, k: (k, 0), w1_mode),        # W1^T tile
            _maybe_buffered_spec((1, H), lambda b, k: (0, 0), resident),        # b1
        ],
        out_specs=out_spec,
        scratch_shapes=[pltpu.VMEM((TB * V, H), jnp.float32)],                  # l1 pre-act accumulator
        compiler_params=pltpu.CompilerParams(
            dimension_semantics=("parallel", "arbitrary"),
            vmem_limit_bytes=vmem_limit),
    )(x, vr2, wu, bu, w1, b1)

    if flat_out:
        out = out.reshape(B, V)
    return out


def categorical_decoder_forward_auto(inp, value_repn, params, **kw):
    """Try the most aggressive config first; fall back if the local Mosaic
    build rejects the lane-dense flattening reshape or pl.Buffered(1)."""
    last_err = None
    for flat_out, single_buffer in ((True, True), (True, False), (False, False)):
        try:
            out = categorical_decoder_forward(
                inp, value_repn, params,
                flat_out=flat_out, single_buffer_weights=single_buffer, **kw)
            return jax.block_until_ready(out)
        except Exception as e:  # fall back to a safer, known-good config
            last_err = e
    raise last_err


def _reference_forward(inp, value_repn, params):
    h = _gelu(inp @ params["wu"] + params["bu"])
    vproj = _gelu(value_repn @ params["w1"] + params["b1"])
    return jnp.einsum("bh,bvh->bv", h, vproj)


if __name__ == "__main__":
    # Small shapes consistent with the module's forward:
    # batch B=2, input_dim D=32, hidden_dim H=32, values-per-item V=8.
    B, D, H, V = 2, 32, 32, 8

    key = jax.random.PRNGKey(0)
    k_inp, k_vr, k_wu, k_bu, k_w1, k_b1 = jax.random.split(key, 6)

    inp = jax.random.normal(k_inp, (B, D), dtype=jnp.float32)
    value_repn = jax.random.normal(k_vr, (B, V, H), dtype=jnp.float32)

    # Deterministic parameter init (Linear weights stored pre-transposed as (in, out)).
    params = {
        "wu": 0.1 * jax.random.normal(k_wu, (D, H), dtype=jnp.float32),
        "bu": 0.1 * jax.random.normal(k_bu, (H,), dtype=jnp.float32),
        "w1": 0.1 * jax.random.normal(k_w1, (H, H), dtype=jnp.float32),
        "b1": 0.1 * jax.random.normal(k_b1, (H,), dtype=jnp.float32),
    }
    # TODO(synk): nn.Dropout is identity in eval mode and self.l2 is unused in
    # forward, so neither is materialized in the kernel.

    ref = _reference_forward(inp, value_repn, params)

    # f32 path (toy widths stay f32) — strict tolerance against the reference.
    score = categorical_decoder_forward_auto(inp, value_repn, params)
    assert score.shape == (B, V)
    assert jnp.allclose(score, ref, atol=1e-5, rtol=1e-5), (score, ref)

    # Exercise the bf16 MXU path (the production default for H >= 256) — loose tolerance.
    score_bf16 = categorical_decoder_forward_auto(inp, value_repn, params,
                                                  compute_dtype=jnp.bfloat16)
    assert score_bf16.shape == (B, V)
    assert jnp.allclose(score_bf16, ref, atol=0.25, rtol=0.1), (score_bf16, ref)

    print("KERNEL_OK")
</pallas_src>

<mosaic_0001>
module attributes {stable_mosaic.version = 11 : i64} {
  func.func @_decoder_kernel(%arg0: i32, %arg1: i32, %arg2: memref<2x32xf32, #tpu.memory_space<vmem>>, %arg3: memref<16x32xf32, #tpu.memory_space<vmem>>, %arg4: memref<32x32xf32, #tpu.memory_space<vmem>>, %arg5: memref<1x32xf32, #tpu.memory_space<vmem>>, %arg6: memref<32x32xf32, #tpu.memory_space<vmem>>, %arg7: memref<1x32xf32, #tpu.memory_space<vmem>>, %arg8: memref<1x16xf32, #tpu.memory_space<vmem>>, %arg9: memref<16x32xf32, #tpu.memory_space<vmem>>) attributes {dimension_semantics = [#tpu.dimension_semantics<parallel>, #tpu.dimension_semantics<arbitrary>], iteration_bounds = array<i64: 1, 1>, scalar_prefetch = 0 : i64, scratch_operands = 1 : i64, tpu.core_type = #tpu.core_type<tc>, window_params = [{transform_indices = @transform_0, window_bounds = array<i64: 2, 32>}, {transform_indices = @transform_1, window_bounds = array<i64: 16, 32>}, {pipeline_mode = #tpu.pipeline_mode<synchronous>, transform_indices = @transform_2, window_bounds = array<i64: 32, 32>}, {pipeline_mode = #tpu.pipeline_mode<synchronous>, transform_indices = @transform_3, window_bounds = array<i64: 1, 32>}, {pipeline_mode = #tpu.pipeline_mode<synchronous>, transform_indices = @transform_4, window_bounds = array<i64: 32, 32>}, {pipeline_mode = #tpu.pipeline_mode<synchronous>, transform_indices = @transform_5, window_bounds = array<i64: 1, 32>}, {transform_indices = @transform_6, window_bounds = array<i64: 1, 16>}]} {
    %c0_i32 = arith.constant 0 : i32
    %0 = arith.cmpi eq, %arg1, %c0_i32 : i32
    %1 = arith.extui %0 : i1 to i32
    %c0_i32_0 = arith.constant 0 : i32
    %2 = arith.cmpi ne, %1, %c0_i32_0 : i32
    scf.if %2 {
      %cst_10 = arith.constant 0.000000e+00 : f32
      %12 = vector.broadcast %cst_10 : f32 to vector<16x32xf32>
      %c0_11 = arith.constant 0 : index
      %c0_12 = arith.constant 0 : index
      %13 = vector.load %arg9[%c0_11, %c0_12] : memref<16x32xf32, #tpu.memory_space<vmem>>, vector<16x32xf32>
      tpu.vector_store %arg9[%c0_11, %c0_12], %12 {strides = array<i32>} : memref<16x32xf32, #tpu.memory_space<vmem>>, vector<16x32xf32>,
    } else {
    }
    %c0 = arith.constant 0 : index
    %c0_1 = arith.constant 0 : index
    %3 = vector.load %arg9[%c0, %c0_1] : memref<16x32xf32, #tpu.memory_space<vmem>>, vector<16x32xf32>
    %c0_2 = arith.constant 0 : index
    %c0_3 = arith.constant 0 : index
    %4 = vector.load %arg3[%c0_2, %c0_3] : memref<16x32xf32, #tpu.memory_space<vmem>>, vector<16x32xf32>
    %c0_4 = arith.constant 0 : index
    %c0_5 = arith.constant 0 : index
    %5 = vector.load %arg6[%c0_4, %c0_5] : memref<32x32xf32, #tpu.memory_space<vmem>>, vector<32x32xf32>
    %cst = arith.constant dense<0.000000e+00> : vector<16x32xf32>
    %6 = tpu.matmul %4, %5, %cst {dimension_numbers = #tpu.dot_dimension_numbers<[1], [0], [0], [1], [0, 0, 1, 1], [], []>} : vector<16x32xf32>, vector<32x32xf32>, vector<16x32xf32> -> vector<16x32xf32>
    %7 = arith.addf %3, %6 : vector<16x32xf32>
    %c0_6 = arith.constant 0 : index
    %c0_7 = arith.constant 0 : index
    %8 = vector.load %arg9[%c0_6, %c0_7] : memref<16x32xf32, #tpu.memory_space<vmem>>, vector<16x32xf32>
    tpu.vector_store %arg9[%c0_6, %c0_7], %7 {strides = array<i32>} : memref<16x32xf32, #tpu.memory_space<vmem>>, vector<16x32xf32>,
    %c0_i32_8 = arith.constant 0 : i32
    %9 = arith.cmpi eq, %arg1, %c0_i32_8 : i32
    %10 = arith.extui %9 : i1 to i32
    %c0_i32_9 = arith.constant 0 : i32
    %11 = arith.cmpi ne, %10, %c0_i32_9 : i32
    scf.if %11 {
      %c0_10 = arith.constant 0 : index
      %c0_11 = arith.constant 0 : index
      %12 = vector.load %arg2[%c0_10, %c0_11] : memref<2x32xf32, #tpu.memory_space<vmem>>, vector<2x32xf32>
      %c0_12 = arith.constant 0 : index
      %c0_13 = arith.constant 0 : index
      %13 = vector.load %arg4[%c0_12, %c0_13] : memref<32x32xf32, #tpu.memory_space<vmem>>, vector<32x32xf32>
      %cst_14 = arith.constant dense<0.000000e+00> : vector<2x32xf32>
      %14 = tpu.matmul %12, %13, %cst_14 {dimension_numbers = #tpu.dot_dimension_numbers<[1], [0], [0], [1], [0, 0, 1, 1], [], []>} : vector<2x32xf32>, vector<32x32xf32>, vector<2x32xf32> -> vector<2x32xf32>
      %c0_15 = arith.constant 0 : index
      %c0_16 = arith.constant 0 : index
      %15 = vector.load %arg5[%c0_15, %c0_16] : memref<1x32xf32, #tpu.memory_space<vmem>>, vector<1x32xf32>
      %16 = vector.broadcast %15 : vector<1x32xf32> to vector<2x32xf32>
      %17 = arith.addf %14, %16 : vector<2x32xf32>
      %cst_17 = arith.constant 5.000000e-01 : f32
      %18 = vector.broadcast %cst_17 : f32 to vector<2x32xf32>
      %19 = arith.mulf %18, %17 : vector<2x32xf32>
      %cst_18 = arith.constant 4.471500e-02 : f32
      %20 = vector.broadcast %cst_18 : f32 to vector<2x32xf32>
      %21 = arith.mulf %20, %17 : vector<2x32xf32>
      %22 = arith.mulf %21, %17 : vector<2x32xf32>
      %23 = arith.mulf %22, %17 : vector<2x32xf32>
      %24 = arith.addf %17, %23 : vector<2x32xf32>
      %cst_19 = arith.constant 0.797884583 : f32
      %25 = vector.broadcast %cst_19 : f32 to vector<2x32xf32>
      %26 = arith.mulf %25, %24 : vector<2x32xf32>
      %27 = math.tanh %26 : vector<2x32xf32>
      %cst_20 = arith.constant 1.000000e+00 : f32
      %28 = vector.broadcast %cst_20 : f32 to vector<2x32xf32>
      %29 = arith.addf %28, %27 : vector<2x32xf32>
      %30 = arith.mulf %19, %29 : vector<2x32xf32>
      %c0_21 = arith.constant 0 : index
      %c0_22 = arith.constant 0 : index
      %31 = vector.load %arg9[%c0_21, %c0_22] : memref<16x32xf32, #tpu.memory_space<vmem>>, vector<16x32xf32>
      %c0_23 = arith.constant 0 : index
      %c0_24 = arith.constant 0 : index
      %32 = vector.load %arg7[%c0_23, %c0_24] : memref<1x32xf32, #tpu.memory_space<vmem>>, vector<1x32xf32>
      %33 = vector.broadcast %32 : vector<1x32xf32> to vector<16x32xf32>
      %34 = arith.addf %31, %33 : vector<16x32xf32>
      %cst_25 = arith.constant 5.000000e-01 : f32
      %35 = vector.broadcast %cst_25 : f32 to vector<16x32xf32>
      %36 = arith.mulf %35, %34 : vector<16x32xf32>
      %cst_26 = arith.constant 4.471500e-02 : f32
      %37 = vector.broadcast %cst_26 : f32 to vector<16x32xf32>
      %38 = arith.mulf %37, %34 : vector<16x32xf32>
      %39 = arith.mulf %38, %34 : vector<16x32xf32>
      %40 = arith.mulf %39, %34 : vector<16x32xf32>
      %41 = arith.addf %34, %40 : vector<16x32xf32>
      %cst_27 = arith.constant 0.797884583 : f32
      %42 = vector.broadcast %cst_27 : f32 to vector<16x32xf32>
      %43 = arith.mulf %42, %41 : vector<16x32xf32>
      %44 = math.tanh %43 : vector<16x32xf32>
      %cst_28 = arith.constant 1.000000e+00 : f32
      %45 = vector.broadcast %cst_28 : f32 to vector<16x32xf32>
      %46 = arith.addf %45, %44 : vector<16x32xf32>
      %47 = arith.mulf %36, %46 : vector<16x32xf32>
      %48 = vector.shape_cast %47 : vector<16x32xf32> to vector<2x8x32xf32>
      %49 = vector.shape_cast %30 : vector<2x32xf32> to vector<2x1x32xf32>
      %50 = vector.broadcast %49 : vector<2x1x32xf32> to vector<2x8x32xf32>
      %51 = arith.mulf %50, %48 : vector<2x8x32xf32>
      %cst_29 = arith.constant dense<0.000000e+00> : vector<2x8xf32>
      %52 = vector.multi_reduction <add>, %51, %cst_29 [2] : vector<2x8x32xf32> to vector<2x8xf32>
      %53 = vector.shape_cast %52 : vector<2x8xf32> to vector<1x16xf32>
      %c0_30 = arith.constant 0 : index
      %c0_31 = arith.constant 0 : index
      %54 = vector.load %arg8[%c0_30, %c0_31] : memref<1x16xf32, #tpu.memory_space<vmem>>, vector<1x16xf32>
      tpu.vector_store %arg8[%c0_30, %c0_31], %53 {strides = array<i32>} : memref<1x16xf32, #tpu.memory_space<vmem>>, vector<1x16xf32>,
    } else {
    }
    return
  }
  func.func @transform_0(%arg0: i32, %arg1: i32) -> (i32, i32) {
    %c0_i32 = arith.constant 0 : i32
    %c0_i32_0 = arith.constant 0 : i32
    return %arg0, %c0_i32 : i32, i32
  }
  func.func @transform_1(%arg0: i32, %arg1: i32) -> (i32, i32) {
    %c0_i32 = arith.constant 0 : i32
    return %arg0, %arg1 : i32, i32
  }
  func.func @transform_2(%arg0: i32, %arg1: i32) -> (i32, i32) {
    %c0_i32 = arith.constant 0 : i32
    %c0_i32_0 = arith.constant 0 : i32
    %c0_i32_1 = arith.constant 0 : i32
    return %c0_i32, %c0_i32_0 : i32, i32
  }
  func.func @transform_3(%arg0: i32, %arg1: i32) -> (i32, i32) {
    %c0_i32 = arith.constant 0 : i32
    %c0_i32_0 = arith.constant 0 : i32
    %c0_i32_1 = arith.constant 0 : i32
    return %c0_i32, %c0_i32_0 : i32, i32
  }
  func.func @transform_4(%arg0: i32, %arg1: i32) -> (i32, i32) {
    %c0_i32 = arith.constant 0 : i32
    %c0_i32_0 = arith.constant 0 : i32
    return %arg1, %c0_i32 : i32, i32
  }
  func.func @transform_5(%arg0: i32, %arg1: i32) -> (i32, i32) {
    %c0_i32 = arith.constant 0 : i32
    %c0_i32_0 = arith.constant 0 : i32
    %c0_i32_1 = arith.constant 0 : i32
    return %c0_i32, %c0_i32_0 : i32, i32
  }
  func.func @transform_6(%arg0: i32, %arg1: i32) -> (i32, i32) {
    %c0_i32 = arith.constant 0 : i32
    %c0_i32_0 = arith.constant 0 : i32
    return %arg0, %c0_i32 : i32, i32
  }
}

module attributes {stable_mosaic.version = 11 : i64} {
  func.func @_decoder_kernel(%arg0: i32, %arg1: i32, %arg2: memref<2x32xf32, #tpu.memory_space<vmem>>, %arg3: memref<16x32xf32, #tpu.memory_space<vmem>>, %arg4: memref<32x32xf32, #tpu.memory_space<vmem>>, %arg5: memref<1x32xf32, #tpu.memory_space<vmem>>, %arg6: memref<32x32xf32, #tpu.memory_space<vmem>>, %arg7: memref<1x32xf32, #tpu.memory_space<vmem>>, %arg8: memref<1x16xf32, #tpu.memory_space<vmem>>, %arg9: memref<16x32xf32, #tpu.memory_space<vmem>>) attributes {dimension_semantics = [#tpu.dimension_semantics<parallel>, #tpu.dimension_semantics<arbitrary>], iteration_bounds = array<i64: 1, 1>, scalar_prefetch = 0 : i64, scratch_operands = 1 : i64, tpu.core_type = #tpu.core_type<tc>, window_params = [{transform_indices = @transform_0, window_bounds = array<i64: 2, 32>}, {transform_indices = @transform_1, window_bounds = array<i64: 16, 32>}, {pipeline_mode = #tpu.pipeline_mode<synchronous>, transform_indices = @transform_2, window_bounds = array<i64: 32, 32>}, {pipeline_mode = #tpu.pipeline_mode<synchronous>, transform_indices = @transform_3, window_bounds = array<i64: 1, 32>}, {transform_indices = @transform_4, window_bounds = array<i64: 32, 32>}, {pipeline_mode = #tpu.pipeline_mode<synchronous>, transform_indices = @transform_5, window_bounds = array<i64: 1, 32>}, {transform_indices = @transform_6, window_bounds = array<i64: 1, 16>}]} {
    %c0_i32 = arith.constant 0 : i32
    %0 = arith.cmpi eq, %arg1, %c0_i32 : i32
    %1 = arith.extui %0 : i1 to i32
    %c0_i32_0 = arith.constant 0 : i32
    %2 = arith.cmpi ne, %1, %c0_i32_0 : i32
    scf.if %2 {
      %cst_10 = arith.constant 0.000000e+00 : f32
      %12 = vector.broadcast %cst_10 : f32 to vector<16x32xf32>
      %c0_11 = arith.constant 0 : index
      %c0_12 = arith.constant 0 : index
      %13 = vector.load %arg9[%c0_11, %c0_12] : memref<16x32xf32, #tpu.memory_space<vmem>>, vector<16x32xf32>
      tpu.vector_store %arg9[%c0_11, %c0_12], %12 {strides = array<i32>} : memref<16x32xf32, #tpu.memory_space<vmem>>, vector<16x32xf32>,
    } else {
    }
    %c0 = arith.constant 0 : index
    %c0_1 = arith.constant 0 : index
    %3 = vector.load %arg9[%c0, %c0_1] : memref<16x32xf32, #tpu.memory_space<vmem>>, vector<16x32xf32>
    %c0_2 = arith.constant 0 : index
    %c0_3 = arith.constant 0 : index
    %4 = vector.load %arg3[%c0_2, %c0_3] : memref<16x32xf32, #tpu.memory_space<vmem>>, vector<16x32xf32>
    %c0_4 = arith.constant 0 : index
    %c0_5 = arith.constant 0 : index
    %5 = vector.load %arg6[%c0_4, %c0_5] : memref<32x32xf32, #tpu.memory_space<vmem>>, vector<32x32xf32>
    %cst = arith.constant dense<0.000000e+00> : vector<16x32xf32>
    %6 = tpu.matmul %4, %5, %cst {dimension_numbers = #tpu.dot_dimension_numbers<[1], [0], [0], [1], [0, 0, 1, 1], [], []>} : vector<16x32xf32>, vector<32x32xf32>, vector<16x32xf32> -> vector<16x32xf32>
    %7 = arith.addf %3, %6 : vector<16x32xf32>
    %c0_6 = arith.constant 0 : index
    %c0_7 = arith.constant 0 : index
    %8 = vector.load %arg9[%c0_6, %c0_7] : memref<16x32xf32, #tpu.memory_space<vmem>>, vector<16x32xf32>
    tpu.vector_store %arg9[%c0_6, %c0_7], %7 {strides = array<i32>} : memref<16x32xf32, #tpu.memory_space<vmem>>, vector<16x32xf32>,
    %c0_i32_8 = arith.constant 0 : i32
    %9 = arith.cmpi eq, %arg1, %c0_i32_8 : i32
    %10 = arith.extui %9 : i1 to i32
    %c0_i32_9 = arith.constant 0 : i32
    %11 = arith.cmpi ne, %10, %c0_i32_9 : i32
    scf.if %11 {
      %c0_10 = arith.constant 0 : index
      %c0_11 = arith.constant 0 : index
      %12 = vector.load %arg2[%c0_10, %c0_11] : memref<2x32xf32, #tpu.memory_space<vmem>>, vector<2x32xf32>
      %c0_12 = arith.constant 0 : index
      %c0_13 = arith.constant 0 : index
      %13 = vector.load %arg4[%c0_12, %c0_13] : memref<32x32xf32, #tpu.memory_space<vmem>>, vector<32x32xf32>
      %cst_14 = arith.constant dense<0.000000e+00> : vector<2x32xf32>
      %14 = tpu.matmul %12, %13, %cst_14 {dimension_numbers = #tpu.dot_dimension_numbers<[1], [0], [0], [1], [0, 0, 1, 1], [], []>} : vector<2x32xf32>, vector<32x32xf32>, vector<2x32xf32> -> vector<2x32xf32>
      %c0_15 = arith.constant 0 : index
      %c0_16 = arith.constant 0 : index
      %15 = vector.load %arg5[%c0_15, %c0_16] : memref<1x32xf32, #tpu.memory_space<vmem>>, vector<1x32xf32>
      %16 = vector.broadcast %15 : vector<1x32xf32> to vector<2x32xf32>
      %17 = arith.addf %14, %16 : vector<2x32xf32>
      %cst_17 = arith.constant 5.000000e-01 : f32
      %18 = vector.broadcast %cst_17 : f32 to vector<2x32xf32>
      %19 = arith.mulf %18, %17 : vector<2x32xf32>
      %cst_18 = arith.constant 4.471500e-02 : f32
      %20 = vector.broadcast %cst_18 : f32 to vector<2x32xf32>
      %21 = arith.mulf %20, %17 : vector<2x32xf32>
      %22 = arith.mulf %21, %17 : vector<2x32xf32>
      %23 = arith.mulf %22, %17 : vector<2x32xf32>
      %24 = arith.addf %17, %23 : vector<2x32xf32>
      %cst_19 = arith.constant 0.797884583 : f32
      %25 = vector.broadcast %cst_19 : f32 to vector<2x32xf32>
      %26 = arith.mulf %25, %24 : vector<2x32xf32>
      %27 = math.tanh %26 : vector<2x32xf32>
      %cst_20 = arith.constant 1.000000e+00 : f32
      %28 = vector.broadcast %cst_20 : f32 to vector<2x32xf32>
      %29 = arith.addf %28, %27 : vector<2x32xf32>
      %30 = arith.mulf %19, %29 : vector<2x32xf32>
      %c0_21 = arith.constant 0 : index
      %c0_22 = arith.constant 0 : index
      %31 = vector.load %arg9[%c0_21, %c0_22] : memref<16x32xf32, #tpu.memory_space<vmem>>, vector<16x32xf32>
      %c0_23 = arith.constant 0 : index
      %c0_24 = arith.constant 0 : index
      %32 = vector.load %arg7[%c0_23, %c0_24] : memref<1x32xf32, #tpu.memory_space<vmem>>, vector<1x32xf32>
      %33 = vector.broadcast %32 : vector<1x32xf32> to vector<16x32xf32>
      %34 = arith.addf %31, %33 : vector<16x32xf32>
      %cst_25 = arith.constant 5.000000e-01 : f32
      %35 = vector.broadcast %cst_25 : f32 to vector<16x32xf32>
      %36 = arith.mulf %35, %34 : vector<16x32xf32>
      %cst_26 = arith.constant 4.471500e-02 : f32
      %37 = vector.broadcast %cst_26 : f32 to vector<16x32xf32>
      %38 = arith.mulf %37, %34 : vector<16x32xf32>
      %39 = arith.mulf %38, %34 : vector<16x32xf32>
      %40 = arith.mulf %39, %34 : vector<16x32xf32>
      %41 = arith.addf %34, %40 : vector<16x32xf32>
      %cst_27 = arith.constant 0.797884583 : f32
      %42 = vector.broadcast %cst_27 : f32 to vector<16x32xf32>
      %43 = arith.mulf %42, %41 : vector<16x32xf32>
      %44 = math.tanh %43 : vector<16x32xf32>
      %cst_28 = arith.constant 1.000000e+00 : f32
      %45 = vector.broadcast %cst_28 : f32 to vector<16x32xf32>
      %46 = arith.addf %45, %44 : vector<16x32xf32>
      %47 = arith.mulf %36, %46 : vector<16x32xf32>
      %48 = vector.shape_cast %47 : vector<16x32xf32> to vector<2x8x32xf32>
      %49 = vector.shape_cast %30 : vector<2x32xf32> to vector<2x1x32xf32>
      %50 = vector.broadcast %49 : vector<2x1x32xf32> to vector<2x8x32xf32>
      %51 = arith.mulf %50, %48 : vector<2x8x32xf32>
      %cst_29 = arith.constant dense<0.000000e+00> : vector<2x8xf32>
      %52 = vector.multi_reduction <add>, %51, %cst_29 [2] : vector<2x8x32xf32> to vector<2x8xf32>
      %53 = vector.shape_cast %52 : vector<2x8xf32> to vector<1x16xf32>
      %c0_30 = arith.constant 0 : index
      %c0_31 = arith.constant 0 : index
      %54 = vector.load %arg8[%c0_30, %c0_31] : memref<1x16xf32, #tpu.memory_space<vmem>>, vector<1x16xf32>
      tpu.vector_store %arg8[%c0_30, %c0_31], %53 {strides = array<i32>} : memref<1x16xf32, #tpu.memory_space<vmem>>, vector<1x16xf32>,
    } else {
    }
    return
  }
  func.func @transform_0(%arg0: i32, %arg1: i32) -> (i32, i32) {
    %c0_i32 = arith.constant 0 : i32
    %c0_i32_0 = arith.constant 0 : i32
    return %arg0, %c0_i32 : i32, i32
  }
  func.func @transform_1(%arg0: i32, %arg1: i32) -> (i32, i32) {
    %c0_i32 = arith.constant 0 : i32
    return %arg0, %arg1 : i32, i32
  }
  func.func @transform_2(%arg0: i32, %arg1: i32) -> (i32, i32) {
    %c0_i32 = arith.constant 0 : i32
    %c0_i32_0 = arith.constant 0 : i32
    %c0_i32_1 = arith.constant 0 : i32
    return %c0_i32, %c0_i32_0 : i32, i32
  }
  func.func @transform_3(%arg0: i32, %arg1: i32) -> (i32, i32) {
    %c0_i32 = arith.constant 0 : i32
    %c0_i32_0 = arith.constant 0 : i32
    %c0_i32_1 = arith.constant 0 : i32
    return %c0_i32, %c0_i32_0 : i32, i32
  }
  func.func @transform_4(%arg0: i32, %arg1: i32) -> (i32, i32) {
    %c0_i32 = arith.constant 0 : i32
    %c0_i32_0 = arith.constant 0 : i32
    return %arg1, %c0_i32 : i32, i32
  }
  func.func @transform_5(%arg0: i32, %arg1: i32) -> (i32, i32) {
    %c0_i32 = arith.constant 0 : i32
    %c0_i32_0 = arith.constant 0 : i32
    %c0_i32_1 = arith.constant 0 : i32
    return %c0_i32, %c0_i32_0 : i32, i32
  }
  func.func @transform_6(%arg0: i32, %arg1: i32) -> (i32, i32) {
    %c0_i32 = arith.constant 0 : i32
    %c0_i32_0 = arith.constant 0 : i32
    return %arg0, %c0_i32 : i32, i32
  }
}

module attributes {stable_mosaic.version = 11 : i64} {
  func.func @_decoder_kernel(%arg0: i32, %arg1: i32, %arg2: memref<2x32xf32, #tpu.memory_space<vmem>>, %arg3: memref<16x32xf32, #tpu.memory_space<vmem>>, %arg4: memref<32x32xf32, #tpu.memory_space<vmem>>, %arg5: memref<1x32xf32, #tpu.memory_space<vmem>>, %arg6: memref<32x32xf32, #tpu.memory_space<vmem>>, %arg7: memref<1x32xf32, #tpu.memory_space<vmem>>, %arg8: memref<2x8xf32, #tpu.memory_space<vmem>>, %arg9: memref<16x32xf32, #tpu.memory_space<vmem>>) attributes {dimension_semantics = [#tpu.dimension_semantics<parallel>, #tpu.dimension_semantics<arbitrary>], iteration_bounds = array<i64: 1, 1>, scalar_prefetch = 0 : i64, scratch_operands = 1 : i64, tpu.core_type = #tpu.core_type<tc>, window_params = [{transform_indices = @transform_0, window_bounds = array<i64: 2, 32>}, {transform_indices = @transform_1, window_bounds = array<i64: 16, 32>}, {pipeline_mode = #tpu.pipeline_mode<synchronous>, transform_indices = @transform_2, window_bounds = array<i64: 32, 32>}, {pipeline_mode = #tpu.pipeline_mode<synchronous>, transform_indices = @transform_3, window_bounds = array<i64: 1, 32>}, {transform_indices = @transform_4, window_bounds = array<i64: 32, 32>}, {pipeline_mode = #tpu.pipeline_mode<synchronous>, transform_indices = @transform_5, window_bounds = array<i64: 1, 32>}, {transform_indices = @transform_6, window_bounds = array<i64: 2, 8>}]} {
    %c0_i32 = arith.constant 0 : i32
    %0 = arith.cmpi eq, %arg1, %c0_i32 : i32
    %1 = arith.extui %0 : i1 to i32
    %c0_i32_0 = arith.constant 0 : i32
    %2 = arith.cmpi ne, %1, %c0_i32_0 : i32
    scf.if %2 {
      %cst_10 = arith.constant 0.000000e+00 : f32
      %12 = vector.broadcast %cst_10 : f32 to vector<16x32xf32>
      %c0_11 = arith.constant 0 : index
      %c0_12 = arith.constant 0 : index
      %13 = vector.load %arg9[%c0_11, %c0_12] : memref<16x32xf32, #tpu.memory_space<vmem>>, vector<16x32xf32>
      tpu.vector_store %arg9[%c0_11, %c0_12], %12 {strides = array<i32>} : memref<16x32xf32, #tpu.memory_space<vmem>>, vector<16x32xf32>,
    } else {
    }
    %c0 = arith.constant 0 : index
    %c0_1 = arith.constant 0 : index
    %3 = vector.load %arg9[%c0, %c0_1] : memref<16x32xf32, #tpu.memory_space<vmem>>, vector<16x32xf32>
    %c0_2 = arith.constant 0 : index
    %c0_3 = arith.constant 0 : index
    %4 = vector.load %arg3[%c0_2, %c0_3] : memref<16x32xf32, #tpu.memory_space<vmem>>, vector<16x32xf32>
    %c0_4 = arith.constant 0 : index
    %c0_5 = arith.constant 0 : index
    %5 = vector.load %arg6[%c0_4, %c0_5] : memref<32x32xf32, #tpu.memory_space<vmem>>, vector<32x32xf32>
    %cst = arith.constant dense<0.000000e+00> : vector<16x32xf32>
    %6 = tpu.matmul %4, %5, %cst {dimension_numbers = #tpu.dot_dimension_numbers<[1], [0], [0], [1], [0, 0, 1, 1], [], []>} : vector<16x32xf32>, vector<32x32xf32>, vector<16x32xf32> -> vector<16x32xf32>
    %7 = arith.addf %3, %6 : vector<16x32xf32>
    %c0_6 = arith.constant 0 : index
    %c0_7 = arith.constant 0 : index
    %8 = vector.load %arg9[%c0_6, %c0_7] : memref<16x32xf32, #tpu.memory_space<vmem>>, vector<16x32xf32>
    tpu.vector_store %arg9[%c0_6, %c0_7], %7 {strides = array<i32>} : memref<16x32xf32, #tpu.memory_space<vmem>>, vector<16x32xf32>,
    %c0_i32_8 = arith.constant 0 : i32
    %9 = arith.cmpi eq, %arg1, %c0_i32_8 : i32
    %10 = arith.extui %9 : i1 to i32
    %c0_i32_9 = arith.constant 0 : i32
    %11 = arith.cmpi ne, %10, %c0_i32_9 : i32
    scf.if %11 {
      %c0_10 = arith.constant 0 : index
      %c0_11 = arith.constant 0 : index
      %12 = vector.load %arg2[%c0_10, %c0_11] : memref<2x32xf32, #tpu.memory_space<vmem>>, vector<2x32xf32>
      %c0_12 = arith.constant 0 : index
      %c0_13 = arith.constant 0 : index
      %13 = vector.load %arg4[%c0_12, %c0_13] : memref<32x32xf32, #tpu.memory_space<vmem>>, vector<32x32xf32>
      %cst_14 = arith.constant dense<0.000000e+00> : vector<2x32xf32>
      %14 = tpu.matmul %12, %13, %cst_14 {dimension_numbers = #tpu.dot_dimension_numbers<[1], [0], [0], [1], [0, 0, 1, 1], [], []>} : vector<2x32xf32>, vector<32x32xf32>, vector<2x32xf32> -> vector<2x32xf32>
      %c0_15 = arith.constant 0 : index
      %c0_16 = arith.constant 0 : index
      %15 = vector.load %arg5[%c0_15, %c0_16] : memref<1x32xf32, #tpu.memory_space<vmem>>, vector<1x32xf32>
      %16 = vector.broadcast %15 : vector<1x32xf32> to vector<2x32xf32>
      %17 = arith.addf %14, %16 : vector<2x32xf32>
      %cst_17 = arith.constant 5.000000e-01 : f32
      %18 = vector.broadcast %cst_17 : f32 to vector<2x32xf32>
      %19 = arith.mulf %18, %17 : vector<2x32xf32>
      %cst_18 = arith.constant 4.471500e-02 : f32
      %20 = vector.broadcast %cst_18 : f32 to vector<2x32xf32>
      %21 = arith.mulf %20, %17 : vector<2x32xf32>
      %22 = arith.mulf %21, %17 : vector<2x32xf32>
      %23 = arith.mulf %22, %17 : vector<2x32xf32>
      %24 = arith.addf %17, %23 : vector<2x32xf32>
      %cst_19 = arith.constant 0.797884583 : f32
      %25 = vector.broadcast %cst_19 : f32 to vector<2x32xf32>
      %26 = arith.mulf %25, %24 : vector<2x32xf32>
      %27 = math.tanh %26 : vector<2x32xf32>
      %cst_20 = arith.constant 1.000000e+00 : f32
      %28 = vector.broadcast %cst_20 : f32 to vector<2x32xf32>
      %29 = arith.addf %28, %27 : vector<2x32xf32>
      %30 = arith.mulf %19, %29 : vector<2x32xf32>
      %c0_21 = arith.constant 0 : index
      %c0_22 = arith.constant 0 : index
      %31 = vector.load %arg9[%c0_21, %c0_22] : memref<16x32xf32, #tpu.memory_space<vmem>>, vector<16x32xf32>
      %c0_23 = arith.constant 0 : index
      %c0_24 = arith.constant 0 : index
      %32 = vector.load %arg7[%c0_23, %c0_24] : memref<1x32xf32, #tpu.memory_space<vmem>>, vector<1x32xf32>
      %33 = vector.broadcast %32 : vector<1x32xf32> to vector<16x32xf32>
      %34 = arith.addf %31, %33 : vector<16x32xf32>
      %cst_25 = arith.constant 5.000000e-01 : f32
      %35 = vector.broadcast %cst_25 : f32 to vector<16x32xf32>
      %36 = arith.mulf %35, %34 : vector<16x32xf32>
      %cst_26 = arith.constant 4.471500e-02 : f32
      %37 = vector.broadcast %cst_26 : f32 to vector<16x32xf32>
      %38 = arith.mulf %37, %34 : vector<16x32xf32>
      %39 = arith.mulf %38, %34 : vector<16x32xf32>
      %40 = arith.mulf %39, %34 : vector<16x32xf32>
      %41 = arith.addf %34, %40 : vector<16x32xf32>
      %cst_27 = arith.constant 0.797884583 : f32
      %42 = vector.broadcast %cst_27 : f32 to vector<16x32xf32>
      %43 = arith.mulf %42, %41 : vector<16x32xf32>
      %44 = math.tanh %43 : vector<16x32xf32>
      %cst_28 = arith.constant 1.000000e+00 : f32
      %45 = vector.broadcast %cst_28 : f32 to vector<16x32xf32>
      %46 = arith.addf %45, %44 : vector<16x32xf32>
      %47 = arith.mulf %36, %46 : vector<16x32xf32>
      %48 = vector.shape_cast %47 : vector<16x32xf32> to vector<2x8x32xf32>
      %49 = vector.shape_cast %30 : vector<2x32xf32> to vector<2x1x32xf32>
      %50 = vector.broadcast %49 : vector<2x1x32xf32> to vector<2x8x32xf32>
      %51 = arith.mulf %50, %48 : vector<2x8x32xf32>
      %cst_29 = arith.constant dense<0.000000e+00> : vector<2x8xf32>
      %52 = vector.multi_reduction <add>, %51, %cst_29 [2] : vector<2x8x32xf32> to vector<2x8xf32>
      %c0_30 = arith.constant 0 : index
      %c0_31 = arith.constant 0 : index
      %53 = vector.load %arg8[%c0_30, %c0_31] : memref<2x8xf32, #tpu.memory_space<vmem>>, vector<2x8xf32>
      tpu.vector_store %arg8[%c0_30, %c0_31], %52 {strides = array<i32>} : memref<2x8xf32, #tpu.memory_space<vmem>>, vector<2x8xf32>,
    } else {
    }
    return
  }
  func.func @transform_0(%arg0: i32, %arg1: i32) -> (i32, i32) {
    %c0_i32 = arith.constant 0 : i32
    %c0_i32_0 = arith.constant 0 : i32
    return %arg0, %c0_i32 : i32, i32
  }
  func.func @transform_1(%arg0: i32, %arg1: i32) -> (i32, i32) {
    %c0_i32 = arith.constant 0 : i32
    return %arg0, %arg1 : i32, i32
  }
  func.func @transform_2(%arg0: i32, %arg1: i32) -> (i32, i32) {
    %c0_i32 = arith.constant 0 : i32
    %c0_i32_0 = arith.constant 0 : i32
    %c0_i32_1 = arith.constant 0 : i32
    return %c0_i32, %c0_i32_0 : i32, i32
  }
  func.func @transform_3(%arg0: i32, %arg1: i32) -> (i32, i32) {
    %c0_i32 = arith.constant 0 : i32
    %c0_i32_0 = arith.constant 0 : i32
    %c0_i32_1 = arith.constant 0 : i32
    return %c0_i32, %c0_i32_0 : i32, i32
  }
  func.func @transform_4(%arg0: i32, %arg1: i32) -> (i32, i32) {
    %c0_i32 = arith.constant 0 : i32
    %c0_i32_0 = arith.constant 0 : i32
    return %arg1, %c0_i32 : i32, i32
  }
  func.func @transform_5(%arg0: i32, %arg1: i32) -> (i32, i32) {
    %c0_i32 = arith.constant 0 : i32
    %c0_i32_0 = arith.constant 0 : i32
    %c0_i32_1 = arith.constant 0 : i32
    return %c0_i32, %c0_i32_0 : i32, i32
  }
  func.func @transform_6(%arg0: i32, %arg1: i32) -> (i32, i32) {
    %c0_i32 = arith.constant 0 : i32
    %c0_i32_0 = arith.constant 0 : i32
    return %arg0, %c0_i32 : i32, i32
  }
}

</mosaic_0001>

<llo_original>
// kernel: tpu_custom_call.1
$region0: #{tpu_custom_call.1}
  #allocation0 [shape = 'u32[]', space=smem, size = 0x4, offset = 0x4, fixed_abs, tag = 'smem constant byte address 0x4 - core index']
  #allocation1 [shape = 'u32[144,128]{1,0:T(1,128)}', space=vmem, size = 0x12000, scoped, tag = 'internal scratch']
  #allocation2 [shape = 'f32[16,32]{1,0:T(8,128)}', space=vmem, size = 0x2000, scoped, tag = 'scratch operand']
  %s0 = inlined_call_operand.hbm [shape: f32[2,32], index: 0, kind: input, shape index: {}]
  %s1 = inlined_call_operand.hbm [shape: f32[16,32], index: 1, kind: input, shape index: {}]
  %s2 = inlined_call_operand.hbm [shape: f32[32,32], index: 2, kind: input, shape index: {}]
  %s3 = inlined_call_operand.vmem [shape: f32[1,32], index: 3, kind: input, shape index: {}]
  %s4 = inlined_call_operand.hbm [shape: f32[32,32], index: 4, kind: input, shape index: {}]
  %s5 = inlined_call_operand.vmem [shape: f32[1,32], index: 5, kind: input, shape index: {}]
  %s6 = inlined_call_operand.hbm [shape: f32[1,16], index: 6, kind: output, shape index: {}]
  %s7 = sld [smem:[#allocation0]]
  $region58: #{tpu_custom_call.1} parent=0
    _
  %s9 = ssub.s32 1, %s7
  %s10 = scalar_select 0, %s9, %s7
  $region1: #{tpu_custom_call.1} parent=0
    #allocation3 [shape = 'u8[1024]{0}', space=vmem, size = 0x400, scoped, tag = 'input window, operand 0, single buffered']
    #allocation4 [shape = 's32[1]{0}', space=sflag, size = 0x4, scoped, tag = 'scoped memory for tpu_custom_call.1']
    #allocation5 [shape = 's32[1]{0}', space=sflag, size = 0x4, scoped, tag = 'scoped memory for tpu_custom_call.1']
    #allocation6 [shape = 'u8[8192]{0}', space=vmem, size = 0x2000, scoped, tag = 'input window, operand 1, single buffered']
    #allocation7 [shape = 's32[1]{0}', space=sflag, size = 0x4, scoped, tag = 'scoped memory for tpu_custom_call.1']
    #allocation8 [shape = 'u8[16384]{0}', space=vmem, size = 0x4000, scoped, tag = 'input window, operand 2, single buffered']
    #allocation9 [shape = 'u8[16384]{0}', space=vmem, size = 0x4000, scoped, tag = 'input window, operand 4, single buffered']
    #allocation10 [shape = 's32[1]{0}', space=sflag, size = 0x4, scoped, tag = 'scoped memory for tpu_custom_call.1']
    #allocation11 [shape = 'u8[512]{0}', space=vmem, size = 0x400, scoped, tag = 'output window, operand 0, single buffered']
    %11 = vsyncpa [#allocation4], 0
    %12 = vsyncpa [#allocation7], 0
    %13 = vsyncpa [#allocation10], 0
    %14 = vsyncpa [#allocation5], 0
    // Predicated region
    $region2: #{tpu_custom_call.1} parent=1 // pred_check
      _
    $region3: #{tpu_custom_call.1} parent=1 // pred_check_branch
      %16 = sbr.rel (0) target = $region5
    $region4: #{tpu_custom_call.1} parent=1 // pred_region
      %s18 = ssub.s32 32, 32
      %19 = vsyncadd [#allocation4], %s18
      %s21 = sshll.u32 [#allocation3], 4
      %s22 = int_to_ptr.vmem [resolvable:$true] %s21
      %24 = dma.hbm_to_vmem [thread:$0]  %s0, 32, %s22, [#allocation4]
    $region5: #{tpu_custom_call.1} parent=1 // pred_fallthru
      _
    // Predicated region
    $region6: #{tpu_custom_call.1} parent=1 // pred_check
      _
    $region7: #{tpu_custom_call.1} parent=1 // pred_check_branch
      %26 = sbr.rel (0) target = $region9
    $region8: #{tpu_custom_call.1} parent=1 // pred_region
      %s28 = ssub.s32 256, 256
      %29 = vsyncadd [#allocation7], %s28
      %s30 = sshll.u32 [#allocation6], 4
      %s31 = int_to_ptr.vmem [resolvable:$true] %s30
      %36 = dma.hbm_to_vmem [thread:$0]  %s1, 256, %s31, [#allocation7], 128, 128, 8
    $region9: #{tpu_custom_call.1} parent=1 // pred_fallthru
      _
    // Predicated region
    $region10: #{tpu_custom_call.1} parent=1 // pred_check
      _
    $region11: #{tpu_custom_call.1} parent=1 // pred_check_branch
      %38 = sbr.rel (0) target = $region13
    $region12: #{tpu_custom_call.1} parent=1 // pred_region
      %s40 = ssub.s32 512, 512
      %41 = vsyncadd [#allocation7], %s40
      %s42 = sshll.u32 [#allocation8], 4
      %s43 = int_to_ptr.vmem [resolvable:$true] %s42
      %48 = dma.hbm_to_vmem [thread:$0]  %s2, 512, %s43, [#allocation7], 128, 128, 8
    $region13: #{tpu_custom_call.1} parent=1 // pred_fallthru
      _
    // Predicated region
    $region14: #{tpu_custom_call.1} parent=1 // pred_check
      _
    $region15: #{tpu_custom_call.1} parent=1 // pred_check_branch
      %50 = sbr.rel (0) target = $region17
    $region16: #{tpu_custom_call.1} parent=1 // pred_region
      _
    $region17: #{tpu_custom_call.1} parent=1 // pred_fallthru
      _
    // Predicated region
    $region18: #{tpu_custom_call.1} parent=1 // pred_check
      _
    $region19: #{tpu_custom_call.1} parent=1 // pred_check_branch
      %52 = sbr.rel (0) target = $region21
    $region20: #{tpu_custom_call.1} parent=1 // pred_region
      %s54 = ssub.s32 512, 512
      %55 = vsyncadd [#allocation10], %s54
      %s56 = sshll.u32 [#allocation9], 4
      %s57 = int_to_ptr.vmem [resolvable:$true] %s56
      %62 = dma.hbm_to_vmem [thread:$0]  %s4, 512, %s57, [#allocation10], 128, 128, 8
    $region21: #{tpu_custom_call.1} parent=1 // pred_fallthru
      _
    // Predicated region
    $region22: #{tpu_custom_call.1} parent=1 // pred_check
      _
    $region23: #{tpu_custom_call.1} parent=1 // pred_check_branch
      %64 = sbr.rel (0) target = $region25
    $region24: #{tpu_custom_call.1} parent=1 // pred_region
      _
    $region25: #{tpu_custom_call.1} parent=1 // pred_fallthru
      _
    // Predicated region
    $region26: #{tpu_custom_call.1} parent=1 // pred_check
      _
    $region27: #{tpu_custom_call.1} parent=1 // pred_check_branch
      %66 = sbr.rel (0) target = $region29
    $region28: #{tpu_custom_call.1} parent=1 // pred_region
      %67 = dma.done [#allocation4], 32
    $region29: #{tpu_custom_call.1} parent=1 // pred_fallthru
      _
    // Predicated region
    $region30: #{tpu_custom_call.1} parent=1 // pred_check
      _
    $region31: #{tpu_custom_call.1} parent=1 // pred_check_branch
      %69 = sbr.rel (0) target = $region33
    $region32: #{tpu_custom_call.1} parent=1 // pred_region
      %70 = dma.done [#allocation7], 256
    $region33: #{tpu_custom_call.1} parent=1 // pred_fallthru
      _
    // Predicated region
    $region34: #{tpu_custom_call.1} parent=1 // pred_check
      _
    $region35: #{tpu_custom_call.1} parent=1 // pred_check_branch
      %72 = sbr.rel (0) target = $region37
    $region36: #{tpu_custom_call.1} parent=1 // pred_region
      %73 = dma.done [#allocation7], 512
    $region37: #{tpu_custom_call.1} parent=1 // pred_fallthru
      _
    // Predicated region
    $region38: #{tpu_custom_call.1} parent=1 // pred_check
      _
    $region39: #{tpu_custom_call.1} parent=1 // pred_check_branch
      %75 = sbr.rel (0) target = $region41
    $region40: #{tpu_custom_call.1} parent=1 // pred_region
      %76 = dma.done [#allocation10], 512
    $region41: #{tpu_custom_call.1} parent=1 // pred_fallthru
      _
    %p77 = scmp.eq.s32.totalorder 0, 0
    // Predicated region
    $region42: #{tpu_custom_call.1} parent=1 // pred_check
      %p78 = pneg %p77
    $region43: #{tpu_custom_call.1} parent=1 // pred_check_branch
      %80 = sbr.rel (%p78) target = $region45
    $region44: #{tpu_custom_call.1} parent=1 // pred_region
      %vm81 = vcmask 261120
      %82 = vst.msk [vmem:[#allocation2] sm:$0xff] %vm81, 0.0
      %83 = vst.msk [vmem:[#allocation2 + $0x8] sm:$0xff] %vm81, 0.0
    $region45: #{tpu_custom_call.1} parent=1 // pred_fallthru
      _
    %v84 = vld [vmem:[#allocation2] sm:$0xff]
    %v85 = vld [vmem:[#allocation2 + $0x8] sm:$0xff]
    %v86 = vld [vmem:[#allocation6] sm:$0xff]
    %v87 = vld [vmem:[#allocation6 + $0x8] sm:$0xff]
    %v88 = vld [vmem:[#allocation9] sm:$0xff]
    %v89 = vld [vmem:[#allocation9 + $0x8] sm:$0xff]
    %v90 = vld [vmem:[#allocation9 + $0x10] sm:$0xff]
    %v91 = vld [vmem:[#allocation9 + $0x18] sm:$0xff]
    %vm92 = vcmask 261120
    %v94 = vsel %vm92, %v86, 0
    %v97 = vsel %vm92, %v87, 0
    %99 = vmatprep.subr.mxu0 0.0
    %100 = vmatpush1.msra.mxu0 0.0
    %101 = vmatprep.subr.mxu0 0.0
    %102 = vmatpush1.msra.mxu0 0.0
    %103 = vmatprep.subr.mxu0 0.0
    %104 = vmatpush1.msra.mxu0 0.0
    %105 = vmatprep.subr.mxu0 0.0
    %106 = vmatpush1.msra.mxu0 0.0
    %107 = vmatprep.subr.mxu0 0.0
    %108 = vmatpush1.msra.mxu0 0.0
    %109 = vmatprep.subr.mxu0 0.0
    %110 = vmatpush1.msra.mxu0 0.0
    %111 = vmatprep.subr.mxu0 0.0
    %112 = vmatpush1.msra.mxu0 0.0
    %113 = vmatprep.subr.mxu0 0.0
    %114 = vmatpush1.msra.mxu0 0.0
    %115 = vmatprep.subr.mxu0 0.0
    %116 = vmatpush1.msra.mxu0 0.0
    %117 = vmatprep.subr.mxu0 0.0
    %118 = vmatpush1.msra.mxu0 0.0
    %119 = vmatprep.subr.mxu0 0.0
    %120 = vmatpush1.msra.mxu0 0.0
    %121 = vmatprep.subr.mxu0 0.0
    %122 = vmatpush1.msra.mxu0 0.0
    %123 = vmatprep.subr.mxu0 0.0
    %124 = vmatpush1.msra.mxu0 %v91
    %125 = vmatprep.subr.mxu0 0.0
    %126 = vmatpush1.msra.mxu0 %v90
    %127 = vmatprep.subr.mxu0 0.0
    %128 = vmatpush1.msra.mxu0 %v89
    %129 = vmatprep.subr.mxu0 0.0
    %130 = vmatpush1.msra.mxu0 %v88
    %131 = vmatprep.subr.mxu0 0.0
    %132 = vmatpush2.msra.mxu0 0.0
    %133 = vmatprep.subr.mxu0 0.0
    %134 = vmatpush2.msra.mxu0 0.0
    %135 = vmatprep.subr.mxu0 0.0
    %136 = vmatpush2.msra.mxu0 0.0
    %137 = vmatprep.subr.mxu0 0.0
    %138 = vmatpush2.msra.mxu0 0.0
    %139 = vmatprep.subr.mxu0 0.0
    %140 = vmatpush2.msra.mxu0 0.0
    %141 = vmatprep.subr.mxu0 0.0
    %142 = vmatpush2.msra.mxu0 0.0
    %143 = vmatprep.subr.mxu0 0.0
    %144 = vmatpush2.msra.mxu0 0.0
    %145 = vmatprep.subr.mxu0 0.0
    %146 = vmatpush2.msra.mxu0 0.0
    %147 = vmatprep.subr.mxu0 0.0
    %148 = vmatpush2.msra.mxu0 0.0
    %149 = vmatprep.subr.mxu0 0.0
    %150 = vmatpush2.msra.mxu0 0.0
    %151 = vmatprep.subr.mxu0 0.0
    %152 = vmatpush2.msra.mxu0 0.0
    %153 = vmatprep.subr.mxu0 0.0
    %154 = vmatpush2.msra.mxu0 0.0
    %155 = vmatprep.subr.mxu0 0.0
    %156 = vmatpush2.msra.mxu0 0.0
    %157 = vmatprep.subr.mxu0 0.0
    %158 = vmatpush2.msra.mxu0 0.0
    %159 = vmatprep.subr.mxu0 0.0
    %160 = vmatpush2.msra.mxu0 0.0
    %161 = vmatprep.subr.mxu0 0.0
    %162 = vmatpush2.msra.mxu0 0.0
    %163 = vmatprep.mubr.f32.mxu0 0.0
    %164 = vmatmul.mubr.f32.gmra.mxu0 %v94
    %v165 = vpop.f32.mrf.mxu0
    %v166 = vadd.f32 0.0, %v165
    %v167 = vpop.f32.mrf.mxu0
    %168 = vmatprep.mubr.f32.mxu0 0.0
    %169 = vmatmul.mubr.f32.gmra.mxu0 %v97
    %v170 = vpop.f32.mrf.mxu0
    %v171 = vadd.f32 0.0, %v170
    %v172 = vpop.f32.mrf.mxu0
    %173 = vdwg.mxu0
    %v174 = vadd.f32 %v84, %v166
    %v175 = vadd.f32 %v85, %v171
    %176 = vst.msk [vmem:[#allocation2] sm:$0xff] %vm92, %v174
    %177 = vst.msk [vmem:[#allocation2 + $0x8] sm:$0xff] %vm92, %v175
    // Predicated region
    $region46: #{tpu_custom_call.1} parent=1 // pred_check
      %p178 = pneg %p77
    $region47: #{tpu_custom_call.1} parent=1 // pred_check_branch
      %180 = sbr.rel (%p178) target = $region49
    $region48: #{tpu_custom_call.1} parent=1 // pred_region
      %v181 = vld [vmem:[#allocation3] sm:$0x3]
      %v182 = vld [vmem:[#allocation8] sm:$0xff]
      %v183 = vld [vmem:[#allocation8 + $0x8] sm:$0xff]
      %v184 = vld [vmem:[#allocation8 + $0x10] sm:$0xff]
      %v185 = vld [vmem:[#allocation8 + $0x18] sm:$0xff]
      %v186 = vld [vmem:[%s3] sm:$0x1]
      %v188 = vlaneseq
      %v189 = vshrl.u32 %v188, 7
      %v190 = vsub.s32 0, %v189
      %v191 = vrot.slane %v186, %v190
      %v194 = vsel %vm92, %v181, 0
      %196 = vmatprep.subr.mxu0 0.0
      %197 = vmatpush1.msra.mxu0 0.0
      %198 = vmatprep.subr.mxu0 0.0
      %199 = vmatpush1.msra.mxu0 0.0
      %200 = vmatprep.subr.mxu0 0.0
      %201 = vmatpush1.msra.mxu0 0.0
      %202 = vmatprep.subr.mxu0 0.0
      %203 = vmatpush1.msra.mxu0 0.0
      %204 = vmatprep.subr.mxu0 0.0
      %205 = vmatpush1.msra.mxu0 0.0
      %206 = vmatprep.subr.mxu0 0.0
      %207 = vmatpush1.msra.mxu0 0.0
      %208 = vmatprep.subr.mxu0 0.0
      %209 = vmatpush1.msra.mxu0 0.0
      %210 = vmatprep.subr.mxu0 0.0
      %211 = vmatpush1.msra.mxu0 0.0
      %212 = vmatprep.subr.mxu0 0.0
      %213 = vmatpush1.msra.mxu0 0.0
      %214 = vmatprep.subr.mxu0 0.0
      %215 = vmatpush1.msra.mxu0 0.0
      %216 = vmatprep.subr.mxu0 0.0
      %217 = vmatpush1.msra.mxu0 0.0
      %218 = vmatprep.subr.mxu0 0.0
      %219 = vmatpush1.msra.mxu0 0.0
      %220 = vmatprep.subr.mxu0 0.0
      %221 = vmatpush1.msra.mxu0 %v185
      %222 = vmatprep.subr.mxu0 0.0
      %223 = vmatpush1.msra.mxu0 %v184
      %224 = vmatprep.subr.mxu0 0.0
      %225 = vmatpush1.msra.mxu0 %v183
      %226 = vmatprep.subr.mxu0 0.0
      %227 = vmatpush1.msra.mxu0 %v182
      %228 = vmatprep.subr.mxu0 0.0
      %229 = vmatpush2.msra.mxu0 0.0
      %230 = vmatprep.subr.mxu0 0.0
      %231 = vmatpush2.msra.mxu0 0.0
      %232 = vmatprep.subr.mxu0 0.0
      %233 = vmatpush2.msra.mxu0 0.0
      %234 = vmatprep.subr.mxu0 0.0
      %235 = vmatpush2.msra.mxu0 0.0
      %236 = vmatprep.subr.mxu0 0.0
      %237 = vmatpush2.msra.mxu0 0.0
      %238 = vmatprep.subr.mxu0 0.0
      %239 = vmatpush2.msra.mxu0 0.0
      %240 = vmatprep.subr.mxu0 0.0
      %241 = vmatpush2.msra.mxu0 0.0
      %242 = vmatprep.subr.mxu0 0.0
      %243 = vmatpush2.msra.mxu0 0.0
      %244 = vmatprep.subr.mxu0 0.0
      %245 = vmatpush2.msra.mxu0 0.0
      %246 = vmatprep.subr.mxu0 0.0
      %247 = vmatpush2.msra.mxu0 0.0
      %248 = vmatprep.subr.mxu0 0.0
      %249 = vmatpush2.msra.mxu0 0.0
      %250 = vmatprep.subr.mxu0 0.0
      %251 = vmatpush2.msra.mxu0 0.0
      %252 = vmatprep.subr.mxu0 0.0
      %253 = vmatpush2.msra.mxu0 0.0
      %254 = vmatprep.subr.mxu0 0.0
      %255 = vmatpush2.msra.mxu0 0.0
      %256 = vmatprep.subr.mxu0 0.0
      %257 = vmatpush2.msra.mxu0 0.0
      %258 = vmatprep.subr.mxu0 0.0
      %259 = vmatpush2.msra.mxu0 0.0
      %260 = vmatprep.mubr.f32.mxu0 0.0
      %261 = vmatmul.mubr.f32.gmra.mxu0 %v194
      %v262 = vpop.f32.mrf.mxu0
      %v263 = vadd.f32 %v191, %v262
      %v264 = vpop.f32.mrf.mxu0
      %265 = vdwg.mxu0
      %v266 = vmul.f32 %v263, 0.5
      %v267 = vmul.f32 %v263, 0.044715
      %v268 = vmul.f32 %v267, %v263
      %v269 = vmul.f32 %v268, %v263
      %v270 = vadd.f32 %v263, %v269
      %v271 = vmul.f32 %v270, 0.7978846
      %v272 = vtanh.pop %v271
      %v273 = vadd.f32 %v272, 1.0
      %v274 = vmul.f32 %v266, %v273
      %v275 = vld [vmem:[#allocation2] sm:$0xff]
      %v276 = vld [vmem:[#allocation2 + $0x8] sm:$0xff]
      %v277 = vld [vmem:[%s5] sm:$0x1]
      %v279 = vlaneseq
      %v280 = vshrl.u32 %v279, 7
      %v281 = vsub.s32 0, %v280
      %v282 = vrot.slane %v277, %v281
      %v284 = vadd.f32 %v275, %v282
      %v285 = vadd.f32 %v276, %v282
      %v286 = vmul.f32 %v284, 0.5
      %v287 = vmul.f32 %v285, 0.5
      %v288 = vmul.f32 %v284, 0.044715
      %v289 = vmul.f32 %v285, 0.044715
      %v290 = vmul.f32 %v288, %v284
      %v291 = vmul.f32 %v289, %v285
      %v292 = vmul.f32 %v290, %v284
      %v293 = vmul.f32 %v291, %v285
      %v294 = vadd.f32 %v284, %v292
      %v295 = vadd.f32 %v285, %v293
      %v296 = vmul.f32 %v294, 0.7978846
      %v297 = vmul.f32 %v295, 0.7978846
      %v298 = vtanh.pop %v296
      %v299 = vtanh.pop %v297
      %v300 = vadd.f32 %v298, 1.0
      %v301 = vadd.f32 %v299, 1.0
      %v302 = vmul.f32 %v286, %v300
      %v303 = vmul.f32 %v287, %v301
      %v306 = vunpack.c.l.s4 1966171168
      %v307 = vunpack.c.0.s8 %v306
      %v308 = vlaneseq
      %v309 = vshrl.u32 %v308, 7
      %v310 = vsub.s32 %v307, %v309
      %v311 = vrot.slane %v274, %v310
      %v312 = vcombine.high %v311, %v311
      %v314 = vunpack.c.l.s4 1966171168
      %v315 = vunpack.c.0.s8 %v314
      %v316 = vlaneseq
      %v317 = vshrl.u32 %v316, 7
      %v318 = vsub.s32 %v315, %v317
      %v319 = vrot.slane %v311, %v318
      %v321 = vunpack.c.l.s4 1966171168
      %v322 = vunpack.c.0.s8 %v321
      %v323 = vlaneseq
      %v324 = vshrl.u32 %v323, 7
      %v325 = vsub.s32 %v322, %v324
      %v326 = vrot.slane %v312, %v325
      %v327 = vlaneseq
      %v328 = vshrl.u32 %v327, 7
      %v329 = vsub.s32 0, %v328
      %v330 = vrot.slane %v319, %v329
      %v331 = vlaneseq
      %v332 = vshrl.u32 %v331, 7
      %v333 = vsub.s32 0, %v332
      %v334 = vrot.slane %v326, %v333
      %v337 = vmul.f32 %v330, %v302
      %v338 = vmul.f32 %v334, %v303
      %v339 = vsel %vm92, %v337, 0.0
      %340 = vadd.xlane.f32.xlu0 %v339
      %v341 = vpop.xlane.xlu0 %340
      %v342 = vsel %vm92, %v338, 0.0
      %343 = vadd.xlane.f32.xlu0 %v342
      %v344 = vpop.xlane.xlu0 %343
      %v347 = vlaneseq
      %v348 = vand.u32 %v347, 127
      %v349 = vlaneseq
      %v350 = vshrl.u32 %v349, 7
      %v351 = vsub.s32 %v348, %v350
      %v352 = vrot.slane %v341, %v351
      %v353 = vadd.s32 %v348, 4294967288
      %v354 = vlaneseq
      %v355 = vshrl.u32 %v354, 7
      %v356 = vsub.s32 %v353, %v355
      %v357 = vrot.slane %v344, %v356
      %vm358 = vcmask 130112
      %v359 = vsel %vm358, %v357, %v352
      %vm361 = vcmask 122880
      %362 = vst.msk [vmem:[#allocation11] sm:$0x1] %vm361, %v359
    $region49: #{tpu_custom_call.1} parent=1 // pred_fallthru
      _
    // Predicated region
    $region50: #{tpu_custom_call.1} parent=1 // pred_check
      _
    $region51: #{tpu_custom_call.1} parent=1 // pred_check_branch
      %364 = sbr.rel (0) target = $region53
    $region52: #{tpu_custom_call.1} parent=1 // pred_region
      %s366 = ssub.s32 16, 16
      %367 = vsyncadd [#allocation5], %s366
      %s369 = sshll.u32 [#allocation11], 4
      %s370 = int_to_ptr.vmem [resolvable:$true] %s369
      %372 = dma.vmem_to_hbm [thread:$0]  %s370, 16, %s6, [#allocation5]
    $region53: #{tpu_custom_call.1} parent=1 // pred_fallthru
      _
    // Predicated region
    $region54: #{tpu_custom_call.1} parent=1 // pred_check
      _
    $region55: #{tpu_custom_call.1} parent=1 // pred_check_branch
      %374 = sbr.rel (0) target = $region57
    $region56: #{tpu_custom_call.1} parent=1 // pred_region
      %375 = dma.done [#allocation5], 16
    $region57: #{tpu_custom_call.1} parent=1 // pred_fallthru
      _
    %376 = vsyncpa [#allocation4], 1
    %377 = vsyncpa [#allocation7], 1
    %378 = vsyncpa [#allocation10], 1
    %379 = vsyncpa [#allocation5], 1

// kernel: tpu_custom_call.1
$region0: #{tpu_custom_call.1}
  #allocation0 [shape = 'u32[]', space=smem, size = 0x4, offset = 0x4, fixed_abs, tag = 'smem constant byte address 0x4 - core index']
  #allocation1 [shape = 'u32[144,128]{1,0:T(1,128)}', space=vmem, size = 0x12000, scoped, tag = 'internal scratch']
  #allocation2 [shape = 'f32[16,32]{1,0:T(8,128)}', space=vmem, size = 0x2000, scoped, tag = 'scratch operand']
  %s0 = inlined_call_operand.hbm [shape: f32[2,32], index: 0, kind: input, shape index: {}]
  %s1 = inlined_call_operand.hbm [shape: f32[16,32], index: 1, kind: input, shape index: {}]
  %s2 = inlined_call_operand.hbm [shape: f32[32,32], index: 2, kind: input, shape index: {}]
  %s3 = inlined_call_operand.vmem [shape: f32[1,32], index: 3, kind: input, shape index: {}]
  %s4 = inlined_call_operand.hbm [shape: f32[32,32], index: 4, kind: input, shape index: {}]
  %s5 = inlined_call_operand.vmem [shape: f32[1,32], index: 5, kind: input, shape index: {}]
  %s6 = inlined_call_operand.hbm [shape: f32[1,16], index: 6, kind: output, shape index: {}]
  %s7 = sld [smem:[#allocation0]]
  $region58: #{tpu_custom_call.1} parent=0
    _
  %s9 = ssub.s32 1, %s7
  %s10 = scalar_select 0, %s9, %s7
  $region1: #{tpu_custom_call.1} parent=0
    #allocation3 [shape = 'u8[1024]{0}', space=vmem, size = 0x400, scoped, tag = 'input window, operand 0, single buffered']
    #allocation4 [shape = 's32[1]{0}', space=sflag, size = 0x4, scoped, tag = 'scoped memory for tpu_custom_call.1']
    #allocation5 [shape = 's32[1]{0}', space=sflag, size = 0x4, scoped, tag = 'scoped memory for tpu_custom_call.1']
    #allocation6 [shape = 'u8[8192]{0}', space=vmem, size = 0x2000, scoped, tag = 'input window, operand 1, single buffered']
    #allocation7 [shape = 's32[1]{0}', space=sflag, size = 0x4, scoped, tag = 'scoped memory for tpu_custom_call.1']
    #allocation8 [shape = 'u8[16384]{0}', space=vmem, size = 0x4000, scoped, tag = 'input window, operand 2, single buffered']
    #allocation9 [shape = 'u8[16384]{0}', space=vmem, size = 0x4000, scoped, tag = 'input window, operand 4, single buffered']
    #allocation10 [shape = 's32[1]{0}', space=sflag, size = 0x4, scoped, tag = 'scoped memory for tpu_custom_call.1']
    #allocation11 [shape = 'u8[512]{0}', space=vmem, size = 0x400, scoped, tag = 'output window, operand 0, single buffered']
    %11 = vsyncpa [#allocation4], 0
    %12 = vsyncpa [#allocation7], 0
    %13 = vsyncpa [#allocation10], 0
    %14 = vsyncpa [#allocation5], 0
    // Predicated region
    $region2: #{tpu_custom_call.1} parent=1 // pred_check
      _
    $region3: #{tpu_custom_call.1} parent=1 // pred_check_branch
      %16 = sbr.rel (0) target = $region5
    $region4: #{tpu_custom_call.1} parent=1 // pred_region
      %s18 = ssub.s32 32, 32
      %19 = vsyncadd [#allocation4], %s18
      %s21 = sshll.u32 [#allocation3], 4
      %s22 = int_to_ptr.vmem [resolvable:$true] %s21
      %24 = dma.hbm_to_vmem [thread:$0]  %s0, 32, %s22, [#allocation4]
    $region5: #{tpu_custom_call.1} parent=1 // pred_fallthru
      _
    // Predicated region
    $region6: #{tpu_custom_call.1} parent=1 // pred_check
      _
    $region7: #{tpu_custom_call.1} parent=1 // pred_check_branch
      %26 = sbr.rel (0) target = $region9
    $region8: #{tpu_custom_call.1} parent=1 // pred_region
      %s28 = ssub.s32 256, 256
      %29 = vsyncadd [#allocation7], %s28
      %s30 = sshll.u32 [#allocation6], 4
      %s31 = int_to_ptr.vmem [resolvable:$true] %s30
      %36 = dma.hbm_to_vmem [thread:$0]  %s1, 256, %s31, [#allocation7], 128, 128, 8
    $region9: #{tpu_custom_call.1} parent=1 // pred_fallthru
      _
    // Predicated region
    $region10: #{tpu_custom_call.1} parent=1 // pred_check
      _
    $region11: #{tpu_custom_call.1} parent=1 // pred_check_branch
      %38 = sbr.rel (0) target = $region13
    $region12: #{tpu_custom_call.1} parent=1 // pred_region
      %s40 = ssub.s32 512, 512
      %41 = vsyncadd [#allocation7], %s40
      %s42 = sshll.u32 [#allocation8], 4
      %s43 = int_to_ptr.vmem [resolvable:$true] %s42
      %48 = dma.hbm_to_vmem [thread:$0]  %s2, 512, %s43, [#allocation7], 128, 128, 8
    $region13: #{tpu_custom_call.1} parent=1 // pred_fallthru
      _
    // Predicated region
    $region14: #{tpu_custom_call.1} parent=1 // pred_check
      _
    $region15: #{tpu_custom_call.1} parent=1 // pred_check_branch
      %50 = sbr.rel (0) target = $region17
    $region16: #{tpu_custom_call.1} parent=1 // pred_region
      _
    $region17: #{tpu_custom_call.1} parent=1 // pred_fallthru
      _
    // Predicated region
    $region18: #{tpu_custom_call.1} parent=1 // pred_check
      _
    $region19: #{tpu_custom_call.1} parent=1 // pred_check_branch
      %52 = sbr.rel (0) target = $region21
    $region20: #{tpu_custom_call.1} parent=1 // pred_region
      %s54 = ssub.s32 512, 512
      %55 = vsyncadd [#allocation10], %s54
      %s56 = sshll.u32 [#allocation9], 4
      %s57 = int_to_ptr.vmem [resolvable:$true] %s56
      %62 = dma.hbm_to_vmem [thread:$0]  %s4, 512, %s57, [#allocation10], 128, 128, 8
    $region21: #{tpu_custom_call.1} parent=1 // pred_fallthru
      _
    // Predicated region
    $region22: #{tpu_custom_call.1} parent=1 // pred_check
      _
    $region23: #{tpu_custom_call.1} parent=1 // pred_check_branch
      %64 = sbr.rel (0) target = $region25
    $region24: #{tpu_custom_call.1} parent=1 // pred_region
      _
    $region25: #{tpu_custom_call.1} parent=1 // pred_fallthru
      _
    // Predicated region
    $region26: #{tpu_custom_call.1} parent=1 // pred_check
      _
    $region27: #{tpu_custom_call.1} parent=1 // pred_check_branch
      %66 = sbr.rel (0) target = $region29
    $region28: #{tpu_custom_call.1} parent=1 // pred_region
      %67 = dma.done [#allocation4], 32
    $region29: #{tpu_custom_call.1} parent=1 // pred_fallthru
      _
    // Predicated region
    $region30: #{tpu_custom_call.1} parent=1 // pred_check
      _
    $region31: #{tpu_custom_call.1} parent=1 // pred_check_branch
      %69 = sbr.rel (0) target = $region33
    $region32: #{tpu_custom_call.1} parent=1 // pred_region
      %70 = dma.done [#allocation7], 256
    $region33: #{tpu_custom_call.1} parent=1 // pred_fallthru
      _
    // Predicated region
    $region34: #{tpu_custom_call.1} parent=1 // pred_check
      _
    $region35: #{tpu_custom_call.1} parent=1 // pred_check_branch
      %72 = sbr.rel (0) target = $region37
    $region36: #{tpu_custom_call.1} parent=1 // pred_region
      %73 = dma.done [#allocation7], 512
    $region37: #{tpu_custom_call.1} parent=1 // pred_fallthru
      _
    // Predicated region
    $region38: #{tpu_custom_call.1} parent=1 // pred_check
      _
    $region39: #{tpu_custom_call.1} parent=1 // pred_check_branch
      %75 = sbr.rel (0) target = $region41
    $region40: #{tpu_custom_call.1} parent=1 // pred_region
      %76 = dma.done [#allocation10], 512
    $region41: #{tpu_custom_call.1} parent=1 // pred_fallthru
      _
    %p77 = scmp.eq.s32.totalorder 0, 0
    // Predicated region
    $region42: #{tpu_custom_call.1} parent=1 // pred_check
      %p78 = pneg %p77
    $region43: #{tpu_custom_call.1} parent=1 // pred_check_branch
      %80 = sbr.rel (%p78) target = $region45
    $region44: #{tpu_custom_call.1} parent=1 // pred_region
      %vm81 = vcmask 261120
      %82 = vst.msk [vmem:[#allocation2] sm:$0xff] %vm81, 0.0
      %83 = vst.msk [vmem:[#allocation2 + $0x8] sm:$0xff] %vm81, 0.0
    $region45: #{tpu_custom_call.1} parent=1 // pred_fallthru
      _
    %v84 = vld [vmem:[#allocation2] sm:$0xff]
    %v85 = vld [vmem:[#allocation2 + $0x8] sm:$0xff]
    %v86 = vld [vmem:[#allocation6] sm:$0xff]
    %v87 = vld [vmem:[#allocation6 + $0x8] sm:$0xff]
    %v88 = vld [vmem:[#allocation9] sm:$0xff]
    %v89 = vld [vmem:[#allocation9 + $0x8] sm:$0xff]
    %v90 = vld [vmem:[#allocation9 + $0x10] sm:$0xff]
    %v91 = vld [vmem:[#allocation9 + $0x18] sm:$0xff]
    %vm92 = vcmask 261120
    %v94 = vsel %vm92, %v86, 0
    %v97 = vsel %vm92, %v87, 0
    %99 = vmatprep.subr.mxu0 0.0
    %100 = vmatpush1.msra.mxu0 0.0
    %101 = vmatprep.subr.mxu0 0.0
    %102 = vmatpush1.msra.mxu0 0.0
    %103 = vmatprep.subr.mxu0 0.0
    %104 = vmatpush1.msra.mxu0 0.0
    %105 = vmatprep.subr.mxu0 0.0
    %106 = vmatpush1.msra.mxu0 0.0
    %107 = vmatprep.subr.mxu0 0.0
    %108 = vmatpush1.msra.mxu0 0.0
    %109 = vmatprep.subr.mxu0 0.0
    %110 = vmatpush1.msra.mxu0 0.0
    %111 = vmatprep.subr.mxu0 0.0
    %112 = vmatpush1.msra.mxu0 0.0
    %113 = vmatprep.subr.mxu0 0.0
    %114 = vmatpush1.msra.mxu0 0.0
    %115 = vmatprep.subr.mxu0 0.0
    %116 = vmatpush1.msra.mxu0 0.0
    %117 = vmatprep.subr.mxu0 0.0
    %118 = vmatpush1.msra.mxu0 0.0
    %119 = vmatprep.subr.mxu0 0.0
    %120 = vmatpush1.msra.mxu0 0.0
    %121 = vmatprep.subr.mxu0 0.0
    %122 = vmatpush1.msra.mxu0 0.0
    %123 = vmatprep.subr.mxu0 0.0
    %124 = vmatpush1.msra.mxu0 %v91
    %125 = vmatprep.subr.mxu0 0.0
    %126 = vmatpush1.msra.mxu0 %v90
    %127 = vmatprep.subr.mxu0 0.0
    %128 = vmatpush1.msra.mxu0 %v89
    %129 = vmatprep.subr.mxu0 0.0
    %130 = vmatpush1.msra.mxu0 %v88
    %131 = vmatprep.subr.mxu0 0.0
    %132 = vmatpush2.msra.mxu0 0.0
    %133 = vmatprep.subr.mxu0 0.0
    %134 = vmatpush2.msra.mxu0 0.0
    %135 = vmatprep.subr.mxu0 0.0
    %136 = vmatpush2.msra.mxu0 0.0
    %137 = vmatprep.subr.mxu0 0.0
    %138 = vmatpush2.msra.mxu0 0.0
    %139 = vmatprep.subr.mxu0 0.0
    %140 = vmatpush2.msra.mxu0 0.0
    %141 = vmatprep.subr.mxu0 0.0
    %142 = vmatpush2.msra.mxu0 0.0
    %143 = vmatprep.subr.mxu0 0.0
    %144 = vmatpush2.msra.mxu0 0.0
    %145 = vmatprep.subr.mxu0 0.0
    %146 = vmatpush2.msra.mxu0 0.0
    %147 = vmatprep.subr.mxu0 0.0
    %148 = vmatpush2.msra.mxu0 0.0
    %149 = vmatprep.subr.mxu0 0.0
    %150 = vmatpush2.msra.mxu0 0.0
    %151 = vmatprep.subr.mxu0 0.0
    %152 = vmatpush2.msra.mxu0 0.0
    %153 = vmatprep.subr.mxu0 0.0
    %154 = vmatpush2.msra.mxu0 0.0
    %155 = vmatprep.subr.mxu0 0.0
    %156 = vmatpush2.msra.mxu0 0.0
    %157 = vmatprep.subr.mxu0 0.0
    %158 = vmatpush2.msra.mxu0 0.0
    %159 = vmatprep.subr.mxu0 0.0
    %160 = vmatpush2.msra.mxu0 0.0
    %161 = vmatprep.subr.mxu0 0.0
    %162 = vmatpush2.msra.mxu0 0.0
    %163 = vmatprep.mubr.f32.mxu0 0.0
    %164 = vmatmul.mubr.f32.gmra.mxu0 %v94
    %v165 = vpop.f32.mrf.mxu0
    %v166 = vadd.f32 0.0, %v165
    %v167 = vpop.f32.mrf.mxu0
    %168 = vmatprep.mubr.f32.mxu0 0.0
    %169 = vmatmul.mubr.f32.gmra.mxu0 %v97
    %v170 = vpop.f32.mrf.mxu0
    %v171 = vadd.f32 0.0, %v170
    %v172 = vpop.f32.mrf.mxu0
    %173 = vdwg.mxu0
    %v174 = vadd.f32 %v84, %v166
    %v175 = vadd.f32 %v85, %v171
    %176 = vst.msk [vmem:[#allocation2] sm:$0xff] %vm92, %v174
    %177 = vst.msk [vmem:[#allocation2 + $0x8] sm:$0xff] %vm92, %v175
    // Predicated region
    $region46: #{tpu_custom_call.1} parent=1 // pred_check
      %p178 = pneg %p77
    $region47: #{tpu_custom_call.1} parent=1 // pred_check_branch
      %180 = sbr.rel (%p178) target = $region49
    $region48: #{tpu_custom_call.1} parent=1 // pred_region
      %v181 = vld [vmem:[#allocation3] sm:$0x3]
      %v182 = vld [vmem:[#allocation8] sm:$0xff]
      %v183 = vld [vmem:[#allocation8 + $0x8] sm:$0xff]
      %v184 = vld [vmem:[#allocation8 + $0x10] sm:$0xff]
      %v185 = vld [vmem:[#allocation8 + $0x18] sm:$0xff]
      %v186 = vld [vmem:[%s3] sm:$0x1]
      %v188 = vlaneseq
      %v189 = vshrl.u32 %v188, 7
      %v190 = vsub.s32 0, %v189
      %v191 = vrot.slane %v186, %v190
      %v194 = vsel %vm92, %v181, 0
      %196 = vmatprep.subr.mxu0 0.0
      %197 = vmatpush1.msra.mxu0 0.0
      %198 = vmatprep.subr.mxu0 0.0
      %199 = vmatpush1.msra.mxu0 0.0
      %200 = vmatprep.subr.mxu0 0.0
      %201 = vmatpush1.msra.mxu0 0.0
      %202 = vmatprep.subr.mxu0 0.0
      %203 = vmatpush1.msra.mxu0 0.0
      %204 = vmatprep.subr.mxu0 0.0
      %205 = vmatpush1.msra.mxu0 0.0
      %206 = vmatprep.subr.mxu0 0.0
      %207 = vmatpush1.msra.mxu0 0.0
      %208 = vmatprep.subr.mxu0 0.0
      %209 = vmatpush1.msra.mxu0 0.0
      %210 = vmatprep.subr.mxu0 0.0
      %211 = vmatpush1.msra.mxu0 0.0
      %212 = vmatprep.subr.mxu0 0.0
      %213 = vmatpush1.msra.mxu0 0.0
      %214 = vmatprep.subr.mxu0 0.0
      %215 = vmatpush1.msra.mxu0 0.0
      %216 = vmatprep.subr.mxu0 0.0
      %217 = vmatpush1.msra.mxu0 0.0
      %218 = vmatprep.subr.mxu0 0.0
      %219 = vmatpush1.msra.mxu0 0.0
      %220 = vmatprep.subr.mxu0 0.0
      %221 = vmatpush1.msra.mxu0 %v185
      %222 = vmatprep.subr.mxu0 0.0
      %223 = vmatpush1.msra.mxu0 %v184
      %224 = vmatprep.subr.mxu0 0.0
      %225 = vmatpush1.msra.mxu0 %v183
      %226 = vmatprep.subr.mxu0 0.0
      %227 = vmatpush1.msra.mxu0 %v182
      %228 = vmatprep.subr.mxu0 0.0
      %229 = vmatpush2.msra.mxu0 0.0
      %230 = vmatprep.subr.mxu0 0.0
      %231 = vmatpush2.msra.mxu0 0.0
      %232 = vmatprep.subr.mxu0 0.0
      %233 = vmatpush2.msra.mxu0 0.0
      %234 = vmatprep.subr.mxu0 0.0
      %235 = vmatpush2.msra.mxu0 0.0
      %236 = vmatprep.subr.mxu0 0.0
      %237 = vmatpush2.msra.mxu0 0.0
      %238 = vmatprep.subr.mxu0 0.0
      %239 = vmatpush2.msra.mxu0 0.0
      %240 = vmatprep.subr.mxu0 0.0
      %241 = vmatpush2.msra.mxu0 0.0
      %242 = vmatprep.subr.mxu0 0.0
      %243 = vmatpush2.msra.mxu0 0.0
      %244 = vmatprep.subr.mxu0 0.0
      %245 = vmatpush2.msra.mxu0 0.0
      %246 = vmatprep.subr.mxu0 0.0
      %247 = vmatpush2.msra.mxu0 0.0
      %248 = vmatprep.subr.mxu0 0.0
      %249 = vmatpush2.msra.mxu0 0.0
      %250 = vmatprep.subr.mxu0 0.0
      %251 = vmatpush2.msra.mxu0 0.0
      %252 = vmatprep.subr.mxu0 0.0
      %253 = vmatpush2.msra.mxu0 0.0
      %254 = vmatprep.subr.mxu0 0.0
      %255 = vmatpush2.msra.mxu0 0.0
      %256 = vmatprep.subr.mxu0 0.0
      %257 = vmatpush2.msra.mxu0 0.0
      %258 = vmatprep.subr.mxu0 0.0
      %259 = vmatpush2.msra.mxu0 0.0
      %260 = vmatprep.mubr.f32.mxu0 0.0
      %261 = vmatmul.mubr.f32.gmra.mxu0 %v194
      %v262 = vpop.f32.mrf.mxu0
      %v263 = vadd.f32 %v191, %v262
      %v264 = vpop.f32.mrf.mxu0
      %265 = vdwg.mxu0
      %v266 = vmul.f32 %v263, 0.5
      %v267 = vmul.f32 %v263, 0.044715
      %v268 = vmul.f32 %v267, %v263
      %v269 = vmul.f32 %v268, %v263
      %v270 = vadd.f32 %v263, %v269
      %v271 = vmul.f32 %v270, 0.7978846
      %v272 = vtanh.pop %v271
      %v273 = vadd.f32 %v272, 1.0
      %v274 = vmul.f32 %v266, %v273
      %v275 = vld [vmem:[#allocation2] sm:$0xff]
      %v276 = vld [vmem:[#allocation2 + $0x8] sm:$0xff]
      %v277 = vld [vmem:[%s5] sm:$0x1]
      %v279 = vlaneseq
      %v280 = vshrl.u32 %v279, 7
      %v281 = vsub.s32 0, %v280
      %v282 = vrot.slane %v277, %v281
      %v284 = vadd.f32 %v275, %v282
      %v285 = vadd.f32 %v276, %v282
      %v286 = vmul.f32 %v284, 0.5
      %v287 = vmul.f32 %v285, 0.5
      %v288 = vmul.f32 %v284, 0.044715
      %v289 = vmul.f32 %v285, 0.044715
      %v290 = vmul.f32 %v288, %v284
      %v291 = vmul.f32 %v289, %v285
      %v292 = vmul.f32 %v290, %v284
      %v293 = vmul.f32 %v291, %v285
      %v294 = vadd.f32 %v284, %v292
      %v295 = vadd.f32 %v285, %v293
      %v296 = vmul.f32 %v294, 0.7978846
      %v297 = vmul.f32 %v295, 0.7978846
      %v298 = vtanh.pop %v296
      %v299 = vtanh.pop %v297
      %v300 = vadd.f32 %v298, 1.0
      %v301 = vadd.f32 %v299, 1.0
      %v302 = vmul.f32 %v286, %v300
      %v303 = vmul.f32 %v287, %v301
      %v306 = vunpack.c.l.s4 1966171168
      %v307 = vunpack.c.0.s8 %v306
      %v308 = vlaneseq
      %v309 = vshrl.u32 %v308, 7
      %v310 = vsub.s32 %v307, %v309
      %v311 = vrot.slane %v274, %v310
      %v312 = vcombine.high %v311, %v311
      %v314 = vunpack.c.l.s4 1966171168
      %v315 = vunpack.c.0.s8 %v314
      %v316 = vlaneseq
      %v317 = vshrl.u32 %v316, 7
      %v318 = vsub.s32 %v315, %v317
      %v319 = vrot.slane %v311, %v318
      %v321 = vunpack.c.l.s4 1966171168
      %v322 = vunpack.c.0.s8 %v321
      %v323 = vlaneseq
      %v324 = vshrl.u32 %v323, 7
      %v325 = vsub.s32 %v322, %v324
      %v326 = vrot.slane %v312, %v325
      %v327 = vlaneseq
      %v328 = vshrl.u32 %v327, 7
      %v329 = vsub.s32 0, %v328
      %v330 = vrot.slane %v319, %v329
      %v331 = vlaneseq
      %v332 = vshrl.u32 %v331, 7
      %v333 = vsub.s32 0, %v332
      %v334 = vrot.slane %v326, %v333
      %v337 = vmul.f32 %v330, %v302
      %v338 = vmul.f32 %v334, %v303
      %v339 = vsel %vm92, %v337, 0.0
      %340 = vadd.xlane.f32.xlu0 %v339
      %v341 = vpop.xlane.xlu0 %340
      %v342 = vsel %vm92, %v338, 0.0
      %343 = vadd.xlane.f32.xlu0 %v342
      %v344 = vpop.xlane.xlu0 %343
      %v347 = vlaneseq
      %v348 = vand.u32 %v347, 127
      %v349 = vlaneseq
      %v350 = vshrl.u32 %v349, 7
      %v351 = vsub.s32 %v348, %v350
      %v352 = vrot.slane %v341, %v351
      %v353 = vadd.s32 %v348, 4294967288
      %v354 = vlaneseq
      %v355 = vshrl.u32 %v354, 7
      %v356 = vsub.s32 %v353, %v355
      %v357 = vrot.slane %v344, %v356
      %vm358 = vcmask 130112
      %v359 = vsel %vm358, %v357, %v352
      %vm361 = vcmask 122880
      %362 = vst.msk [vmem:[#allocation11] sm:$0x1] %vm361, %v359
    $region49: #{tpu_custom_call.1} parent=1 // pred_fallthru
      _
    // Predicated region
    $region50: #{tpu_custom_call.1} parent=1 // pred_check
      _
    $region51: #{tpu_custom_call.1} parent=1 // pred_check_branch
      %364 = sbr.rel (0) target = $region53
    $region52: #{tpu_custom_call.1} parent=1 // pred_region
      %s366 = ssub.s32 16, 16
      %367 = vsyncadd [#allocation5], %s366
      %s369 = sshll.u32 [#allocation11], 4
      %s370 = int_to_ptr.vmem [resolvable:$true] %s369
      %372 = dma.vmem_to_hbm [thread:$0]  %s370, 16, %s6, [#allocation5]
    $region53: #{tpu_custom_call.1} parent=1 // pred_fallthru
      _
    // Predicated region
    $region54: #{tpu_custom_call.1} parent=1 // pred_check
      _
    $region55: #{tpu_custom_call.1} parent=1 // pred_check_branch
      %374 = sbr.rel (0) target = $region57
    $region56: #{tpu_custom_call.1} parent=1 // pred_region
      %375 = dma.done [#allocation5], 16
    $region57: #{tpu_custom_call.1} parent=1 // pred_fallthru
      _
    %376 = vsyncpa [#allocation4], 1
    %377 = vsyncpa [#allocation7], 1
    %378 = vsyncpa [#allocation10], 1
    %379 = vsyncpa [#allocation5], 1

// kernel: tpu_custom_call.1
$region0: #{tpu_custom_call.1}
  #allocation0 [shape = 'u32[]', space=smem, size = 0x4, offset = 0x4, fixed_abs, tag = 'smem constant byte address 0x4 - core index']
  #allocation1 [shape = 'u32[144,128]{1,0:T(1,128)}', space=vmem, size = 0x12000, scoped, tag = 'internal scratch']
  #allocation2 [shape = 'f32[16,32]{1,0:T(8,128)}', space=vmem, size = 0x2000, scoped, tag = 'scratch operand']
  %s0 = inlined_call_operand.hbm [shape: f32[2,32], index: 0, kind: input, shape index: {}]
  %s1 = inlined_call_operand.hbm [shape: f32[16,32], index: 1, kind: input, shape index: {}]
  %s2 = inlined_call_operand.hbm [shape: f32[32,32], index: 2, kind: input, shape index: {}]
  %s3 = inlined_call_operand.vmem [shape: f32[1,32], index: 3, kind: input, shape index: {}]
  %s4 = inlined_call_operand.hbm [shape: f32[32,32], index: 4, kind: input, shape index: {}]
  %s5 = inlined_call_operand.vmem [shape: f32[1,32], index: 5, kind: input, shape index: {}]
  %s6 = inlined_call_operand.hbm [shape: f32[2,8], index: 6, kind: output, shape index: {}]
  %s7 = sld [smem:[#allocation0]]
  $region58: #{tpu_custom_call.1} parent=0
    _
  %s9 = ssub.s32 1, %s7
  %s10 = scalar_select 0, %s9, %s7
  $region1: #{tpu_custom_call.1} parent=0
    #allocation3 [shape = 'u8[1024]{0}', space=vmem, size = 0x400, scoped, tag = 'input window, operand 0, single buffered']
    #allocation4 [shape = 's32[1]{0}', space=sflag, size = 0x4, scoped, tag = 'scoped memory for tpu_custom_call.1']
    #allocation5 [shape = 's32[1]{0}', space=sflag, size = 0x4, scoped, tag = 'scoped memory for tpu_custom_call.1']
    #allocation6 [shape = 'u8[8192]{0}', space=vmem, size = 0x2000, scoped, tag = 'input window, operand 1, single buffered']
    #allocation7 [shape = 's32[1]{0}', space=sflag, size = 0x4, scoped, tag = 'scoped memory for tpu_custom_call.1']
    #allocation8 [shape = 'u8[16384]{0}', space=vmem, size = 0x4000, scoped, tag = 'input window, operand 2, single buffered']
    #allocation9 [shape = 'u8[16384]{0}', space=vmem, size = 0x4000, scoped, tag = 'input window, operand 4, single buffered']
    #allocation10 [shape = 's32[1]{0}', space=sflag, size = 0x4, scoped, tag = 'scoped memory for tpu_custom_call.1']
    #allocation11 [shape = 'u8[1024]{0}', space=vmem, size = 0x400, scoped, tag = 'output window, operand 0, single buffered']
    %11 = vsyncpa [#allocation4], 0
    %12 = vsyncpa [#allocation7], 0
    %13 = vsyncpa [#allocation10], 0
    %14 = vsyncpa [#allocation5], 0
    // Predicated region
    $region2: #{tpu_custom_call.1} parent=1 // pred_check
      _
    $region3: #{tpu_custom_call.1} parent=1 // pred_check_branch
      %16 = sbr.rel (0) target = $region5
    $region4: #{tpu_custom_call.1} parent=1 // pred_region
      %s18 = ssub.s32 32, 32
      %19 = vsyncadd [#allocation4], %s18
      %s21 = sshll.u32 [#allocation3], 4
      %s22 = int_to_ptr.vmem [resolvable:$true] %s21
      %24 = dma.hbm_to_vmem [thread:$0]  %s0, 32, %s22, [#allocation4]
    $region5: #{tpu_custom_call.1} parent=1 // pred_fallthru
      _
    // Predicated region
    $region6: #{tpu_custom_call.1} parent=1 // pred_check
      _
    $region7: #{tpu_custom_call.1} parent=1 // pred_check_branch
      %26 = sbr.rel (0) target = $region9
    $region8: #{tpu_custom_call.1} parent=1 // pred_region
      %s28 = ssub.s32 256, 256
      %29 = vsyncadd [#allocation7], %s28
      %s30 = sshll.u32 [#allocation6], 4
      %s31 = int_to_ptr.vmem [resolvable:$true] %s30
      %36 = dma.hbm_to_vmem [thread:$0]  %s1, 256, %s31, [#allocation7], 128, 128, 8
    $region9: #{tpu_custom_call.1} parent=1 // pred_fallthru
      _
    // Predicated region
    $region10: #{tpu_custom_call.1} parent=1 // pred_check
      _
    $region11: #{tpu_custom_call.1} parent=1 // pred_check_branch
      %38 = sbr.rel (0) target = $region13
    $region12: #{tpu_custom_call.1} parent=1 // pred_region
      %s40 = ssub.s32 512, 512
      %41 = vsyncadd [#allocation7], %s40
      %s42 = sshll.u32 [#allocation8], 4
      %s43 = int_to_ptr.vmem [resolvable:$true] %s42
      %48 = dma.hbm_to_vmem [thread:$0]  %s2, 512, %s43, [#allocation7], 128, 128, 8
    $region13: #{tpu_custom_call.1} parent=1 // pred_fallthru
      _
    // Predicated region
    $region14: #{tpu_custom_call.1} parent=1 // pred_check
      _
    $region15: #{tpu_custom_call.1} parent=1 // pred_check_branch
      %50 = sbr.rel (0) target = $region17
    $region16: #{tpu_custom_call.1} parent=1 // pred_region
      _
    $region17: #{tpu_custom_call.1} parent=1 // pred_fallthru
      _
    // Predicated region
    $region18: #{tpu_custom_call.1} parent=1 // pred_check
      _
    $region19: #{tpu_custom_call.1} parent=1 // pred_check_branch
      %52 = sbr.rel (0) target = $region21
    $region20: #{tpu_custom_call.1} parent=1 // pred_region
      %s54 = ssub.s32 512, 512
      %55 = vsyncadd [#allocation10], %s54
      %s56 = sshll.u32 [#allocation9], 4
      %s57 = int_to_ptr.vmem [resolvable:$true] %s56
      %62 = dma.hbm_to_vmem [thread:$0]  %s4, 512, %s57, [#allocation10], 128, 128, 8
    $region21: #{tpu_custom_call.1} parent=1 // pred_fallthru
      _
    // Predicated region
    $region22: #{tpu_custom_call.1} parent=1 // pred_check
      _
    $region23: #{tpu_custom_call.1} parent=1 // pred_check_branch
      %64 = sbr.rel (0) target = $region25
    $region24: #{tpu_custom_call.1} parent=1 // pred_region
      _
    $region25: #{tpu_custom_call.1} parent=1 // pred_fallthru
      _
    // Predicated region
    $region26: #{tpu_custom_call.1} parent=1 // pred_check
      _
    $region27: #{tpu_custom_call.1} parent=1 // pred_check_branch
      %66 = sbr.rel (0) target = $region29
    $region28: #{tpu_custom_call.1} parent=1 // pred_region
      %67 = dma.done [#allocation4], 32
    $region29: #{tpu_custom_call.1} parent=1 // pred_fallthru
      _
    // Predicated region
    $region30: #{tpu_custom_call.1} parent=1 // pred_check
      _
    $region31: #{tpu_custom_call.1} parent=1 // pred_check_branch
      %69 = sbr.rel (0) target = $region33
    $region32: #{tpu_custom_call.1} parent=1 // pred_region
      %70 = dma.done [#allocation7], 256
    $region33: #{tpu_custom_call.1} parent=1 // pred_fallthru
      _
    // Predicated region
    $region34: #{tpu_custom_call.1} parent=1 // pred_check
      _
    $region35: #{tpu_custom_call.1} parent=1 // pred_check_branch
      %72 = sbr.rel (0) target = $region37
    $region36: #{tpu_custom_call.1} parent=1 // pred_region
      %73 = dma.done [#allocation7], 512
    $region37: #{tpu_custom_call.1} parent=1 // pred_fallthru
      _
    // Predicated region
    $region38: #{tpu_custom_call.1} parent=1 // pred_check
      _
    $region39: #{tpu_custom_call.1} parent=1 // pred_check_branch
      %75 = sbr.rel (0) target = $region41
    $region40: #{tpu_custom_call.1} parent=1 // pred_region
      %76 = dma.done [#allocation10], 512
    $region41: #{tpu_custom_call.1} parent=1 // pred_fallthru
      _
    %p77 = scmp.eq.s32.totalorder 0, 0
    // Predicated region
    $region42: #{tpu_custom_call.1} parent=1 // pred_check
      %p78 = pneg %p77
    $region43: #{tpu_custom_call.1} parent=1 // pred_check_branch
      %80 = sbr.rel (%p78) target = $region45
    $region44: #{tpu_custom_call.1} parent=1 // pred_region
      %vm81 = vcmask 261120
      %82 = vst.msk [vmem:[#allocation2] sm:$0xff] %vm81, 0.0
      %83 = vst.msk [vmem:[#allocation2 + $0x8] sm:$0xff] %vm81, 0.0
    $region45: #{tpu_custom_call.1} parent=1 // pred_fallthru
      _
    %v84 = vld [vmem:[#allocation2] sm:$0xff]
    %v85 = vld [vmem:[#allocation2 + $0x8] sm:$0xff]
    %v86 = vld [vmem:[#allocation6] sm:$0xff]
    %v87 = vld [vmem:[#allocation6 + $0x8] sm:$0xff]
    %v88 = vld [vmem:[#allocation9] sm:$0xff]
    %v89 = vld [vmem:[#allocation9 + $0x8] sm:$0xff]
    %v90 = vld [vmem:[#allocation9 + $0x10] sm:$0xff]
    %v91 = vld [vmem:[#allocation9 + $0x18] sm:$0xff]
    %vm92 = vcmask 261120
    %v94 = vsel %vm92, %v86, 0
    %v97 = vsel %vm92, %v87, 0
    %99 = vmatprep.subr.mxu0 0.0
    %100 = vmatpush1.msra.mxu0 0.0
    %101 = vmatprep.subr.mxu0 0.0
    %102 = vmatpush1.msra.mxu0 0.0
    %103 = vmatprep.subr.mxu0 0.0
    %104 = vmatpush1.msra.mxu0 0.0
    %105 = vmatprep.subr.mxu0 0.0
    %106 = vmatpush1.msra.mxu0 0.0
    %107 = vmatprep.subr.mxu0 0.0
    %108 = vmatpush1.msra.mxu0 0.0
    %109 = vmatprep.subr.mxu0 0.0
    %110 = vmatpush1.msra.mxu0 0.0
    %111 = vmatprep.subr.mxu0 0.0
    %112 = vmatpush1.msra.mxu0 0.0
    %113 = vmatprep.subr.mxu0 0.0
    %114 = vmatpush1.msra.mxu0 0.0
    %115 = vmatprep.subr.mxu0 0.0
    %116 = vmatpush1.msra.mxu0 0.0
    %117 = vmatprep.subr.mxu0 0.0
    %118 = vmatpush1.msra.mxu0 0.0
    %119 = vmatprep.subr.mxu0 0.0
    %120 = vmatpush1.msra.mxu0 0.0
    %121 = vmatprep.subr.mxu0 0.0
    %122 = vmatpush1.msra.mxu0 0.0
    %123 = vmatprep.subr.mxu0 0.0
    %124 = vmatpush1.msra.mxu0 %v91
    %125 = vmatprep.subr.mxu0 0.0
    %126 = vmatpush1.msra.mxu0 %v90
    %127 = vmatprep.subr.mxu0 0.0
    %128 = vmatpush1.msra.mxu0 %v89
    %129 = vmatprep.subr.mxu0 0.0
    %130 = vmatpush1.msra.mxu0 %v88
    %131 = vmatprep.subr.mxu0 0.0
    %132 = vmatpush2.msra.mxu0 0.0
    %133 = vmatprep.subr.mxu0 0.0
    %134 = vmatpush2.msra.mxu0 0.0
    %135 = vmatprep.subr.mxu0 0.0
    %136 = vmatpush2.msra.mxu0 0.0
    %137 = vmatprep.subr.mxu0 0.0
    %138 = vmatpush2.msra.mxu0 0.0
    %139 = vmatprep.subr.mxu0 0.0
    %140 = vmatpush2.msra.mxu0 0.0
    %141 = vmatprep.subr.mxu0 0.0
    %142 = vmatpush2.msra.mxu0 0.0
    %143 = vmatprep.subr.mxu0 0.0
    %144 = vmatpush2.msra.mxu0 0.0
    %145 = vmatprep.subr.mxu0 0.0
    %146 = vmatpush2.msra.mxu0 0.0
    %147 = vmatprep.subr.mxu0 0.0
    %148 = vmatpush2.msra.mxu0 0.0
    %149 = vmatprep.subr.mxu0 0.0
    %150 = vmatpush2.msra.mxu0 0.0
    %151 = vmatprep.subr.mxu0 0.0
    %152 = vmatpush2.msra.mxu0 0.0
    %153 = vmatprep.subr.mxu0 0.0
    %154 = vmatpush2.msra.mxu0 0.0
    %155 = vmatprep.subr.mxu0 0.0
    %156 = vmatpush2.msra.mxu0 0.0
    %157 = vmatprep.subr.mxu0 0.0
    %158 = vmatpush2.msra.mxu0 0.0
    %159 = vmatprep.subr.mxu0 0.0
    %160 = vmatpush2.msra.mxu0 0.0
    %161 = vmatprep.subr.mxu0 0.0
    %162 = vmatpush2.msra.mxu0 0.0
    %163 = vmatprep.mubr.f32.mxu0 0.0
    %164 = vmatmul.mubr.f32.gmra.mxu0 %v94
    %v165 = vpop.f32.mrf.mxu0
    %v166 = vadd.f32 0.0, %v165
    %v167 = vpop.f32.mrf.mxu0
    %168 = vmatprep.mubr.f32.mxu0 0.0
    %169 = vmatmul.mubr.f32.gmra.mxu0 %v97
    %v170 = vpop.f32.mrf.mxu0
    %v171 = vadd.f32 0.0, %v170
    %v172 = vpop.f32.mrf.mxu0
    %173 = vdwg.mxu0
    %v174 = vadd.f32 %v84, %v166
    %v175 = vadd.f32 %v85, %v171
    %176 = vst.msk [vmem:[#allocation2] sm:$0xff] %vm92, %v174
    %177 = vst.msk [vmem:[#allocation2 + $0x8] sm:$0xff] %vm92, %v175
    // Predicated region
    $region46: #{tpu_custom_call.1} parent=1 // pred_check
      %p178 = pneg %p77
    $region47: #{tpu_custom_call.1} parent=1 // pred_check_branch
      %180 = sbr.rel (%p178) target = $region49
    $region48: #{tpu_custom_call.1} parent=1 // pred_region
      %v181 = vld [vmem:[#allocation3] sm:$0x3]
      %v182 = vld [vmem:[#allocation8] sm:$0xff]
      %v183 = vld [vmem:[#allocation8 + $0x8] sm:$0xff]
      %v184 = vld [vmem:[#allocation8 + $0x10] sm:$0xff]
      %v185 = vld [vmem:[#allocation8 + $0x18] sm:$0xff]
      %v186 = vld [vmem:[%s3] sm:$0x1]
      %v188 = vlaneseq
      %v189 = vshrl.u32 %v188, 7
      %v190 = vsub.s32 0, %v189
      %v191 = vrot.slane %v186, %v190
      %v194 = vsel %vm92, %v181, 0
      %196 = vmatprep.subr.mxu0 0.0
      %197 = vmatpush1.msra.mxu0 0.0
      %198 = vmatprep.subr.mxu0 0.0
      %199 = vmatpush1.msra.mxu0 0.0
      %200 = vmatprep.subr.mxu0 0.0
      %201 = vmatpush1.msra.mxu0 0.0
      %202 = vmatprep.subr.mxu0 0.0
      %203 = vmatpush1.msra.mxu0 0.0
      %204 = vmatprep.subr.mxu0 0.0
      %205 = vmatpush1.msra.mxu0 0.0
      %206 = vmatprep.subr.mxu0 0.0
      %207 = vmatpush1.msra.mxu0 0.0
      %208 = vmatprep.subr.mxu0 0.0
      %209 = vmatpush1.msra.mxu0 0.0
      %210 = vmatprep.subr.mxu0 0.0
      %211 = vmatpush1.msra.mxu0 0.0
      %212 = vmatprep.subr.mxu0 0.0
      %213 = vmatpush1.msra.mxu0 0.0
      %214 = vmatprep.subr.mxu0 0.0
      %215 = vmatpush1.msra.mxu0 0.0
      %216 = vmatprep.subr.mxu0 0.0
      %217 = vmatpush1.msra.mxu0 0.0
      %218 = vmatprep.subr.mxu0 0.0
      %219 = vmatpush1.msra.mxu0 0.0
      %220 = vmatprep.subr.mxu0 0.0
      %221 = vmatpush1.msra.mxu0 %v185
      %222 = vmatprep.subr.mxu0 0.0
      %223 = vmatpush1.msra.mxu0 %v184
      %224 = vmatprep.subr.mxu0 0.0
      %225 = vmatpush1.msra.mxu0 %v183
      %226 = vmatprep.subr.mxu0 0.0
      %227 = vmatpush1.msra.mxu0 %v182
      %228 = vmatprep.subr.mxu0 0.0
      %229 = vmatpush2.msra.mxu0 0.0
      %230 = vmatprep.subr.mxu0 0.0
      %231 = vmatpush2.msra.mxu0 0.0
      %232 = vmatprep.subr.mxu0 0.0
      %233 = vmatpush2.msra.mxu0 0.0
      %234 = vmatprep.subr.mxu0 0.0
      %235 = vmatpush2.msra.mxu0 0.0
      %236 = vmatprep.subr.mxu0 0.0
      %237 = vmatpush2.msra.mxu0 0.0
      %238 = vmatprep.subr.mxu0 0.0
      %239 = vmatpush2.msra.mxu0 0.0
      %240 = vmatprep.subr.mxu0 0.0
      %241 = vmatpush2.msra.mxu0 0.0
      %242 = vmatprep.subr.mxu0 0.0
      %243 = vmatpush2.msra.mxu0 0.0
      %244 = vmatprep.subr.mxu0 0.0
      %245 = vmatpush2.msra.mxu0 0.0
      %246 = vmatprep.subr.mxu0 0.0
      %247 = vmatpush2.msra.mxu0 0.0
      %248 = vmatprep.subr.mxu0 0.0
      %249 = vmatpush2.msra.mxu0 0.0
      %250 = vmatprep.subr.mxu0 0.0
      %251 = vmatpush2.msra.mxu0 0.0
      %252 = vmatprep.subr.mxu0 0.0
      %253 = vmatpush2.msra.mxu0 0.0
      %254 = vmatprep.subr.mxu0 0.0
      %255 = vmatpush2.msra.mxu0 0.0
      %256 = vmatprep.subr.mxu0 0.0
      %257 = vmatpush2.msra.mxu0 0.0
      %258 = vmatprep.subr.mxu0 0.0
      %259 = vmatpush2.msra.mxu0 0.0
      %260 = vmatprep.mubr.f32.mxu0 0.0
      %261 = vmatmul.mubr.f32.gmra.mxu0 %v194
      %v262 = vpop.f32.mrf.mxu0
      %v263 = vadd.f32 %v191, %v262
      %v264 = vpop.f32.mrf.mxu0
      %265 = vdwg.mxu0
      %v266 = vmul.f32 %v263, 0.5
      %v267 = vmul.f32 %v263, 0.044715
      %v268 = vmul.f32 %v267, %v263
      %v269 = vmul.f32 %v268, %v263
      %v270 = vadd.f32 %v263, %v269
      %v271 = vmul.f32 %v270, 0.7978846
      %v272 = vtanh.pop %v271
      %v273 = vadd.f32 %v272, 1.0
      %v274 = vmul.f32 %v266, %v273
      %v275 = vld [vmem:[#allocation2] sm:$0xff]
      %v276 = vld [vmem:[#allocation2 + $0x8] sm:$0xff]
      %v277 = vld [vmem:[%s5] sm:$0x1]
      %v279 = vlaneseq
      %v280 = vshrl.u32 %v279, 7
      %v281 = vsub.s32 0, %v280
      %v282 = vrot.slane %v277, %v281
      %v284 = vadd.f32 %v275, %v282
      %v285 = vadd.f32 %v276, %v282
      %v286 = vmul.f32 %v284, 0.5
      %v287 = vmul.f32 %v285, 0.5
      %v288 = vmul.f32 %v284, 0.044715
      %v289 = vmul.f32 %v285, 0.044715
      %v290 = vmul.f32 %v288, %v284
      %v291 = vmul.f32 %v289, %v285
      %v292 = vmul.f32 %v290, %v284
      %v293 = vmul.f32 %v291, %v285
      %v294 = vadd.f32 %v284, %v292
      %v295 = vadd.f32 %v285, %v293
      %v296 = vmul.f32 %v294, 0.7978846
      %v297 = vmul.f32 %v295, 0.7978846
      %v298 = vtanh.pop %v296
      %v299 = vtanh.pop %v297
      %v300 = vadd.f32 %v298, 1.0
      %v301 = vadd.f32 %v299, 1.0
      %v302 = vmul.f32 %v286, %v300
      %v303 = vmul.f32 %v287, %v301
      %v306 = vunpack.c.l.s4 1966171168
      %v307 = vunpack.c.0.s8 %v306
      %v308 = vlaneseq
      %v309 = vshrl.u32 %v308, 7
      %v310 = vsub.s32 %v307, %v309
      %v311 = vrot.slane %v274, %v310
      %v312 = vcombine.high %v311, %v311
      %v314 = vunpack.c.l.s4 1966171168
      %v315 = vunpack.c.0.s8 %v314
      %v316 = vlaneseq
      %v317 = vshrl.u32 %v316, 7
      %v318 = vsub.s32 %v315, %v317
      %v319 = vrot.slane %v311, %v318
      %v321 = vunpack.c.l.s4 1966171168
      %v322 = vunpack.c.0.s8 %v321
      %v323 = vlaneseq
      %v324 = vshrl.u32 %v323, 7
      %v325 = vsub.s32 %v322, %v324
      %v326 = vrot.slane %v312, %v325
      %v327 = vlaneseq
      %v328 = vshrl.u32 %v327, 7
      %v329 = vsub.s32 0, %v328
      %v330 = vrot.slane %v319, %v329
      %v331 = vlaneseq
      %v332 = vshrl.u32 %v331, 7
      %v333 = vsub.s32 0, %v332
      %v334 = vrot.slane %v326, %v333
      %v337 = vmul.f32 %v330, %v302
      %v338 = vmul.f32 %v334, %v303
      %v339 = vsel %vm92, %v337, 0.0
      %340 = vadd.xlane.f32.xlu0 %v339
      %v341 = vpop.xlane.xlu0 %340
      %v342 = vsel %vm92, %v338, 0.0
      %343 = vadd.xlane.f32.xlu0 %v342
      %v344 = vpop.xlane.xlu0 %343
      %v347 = vlaneseq
      %v348 = vand.u32 %v347, 127
      %v349 = vlaneseq
      %v350 = vshrl.u32 %v349, 7
      %v351 = vsub.s32 %v348, %v350
      %v352 = vrot.slane %v341, %v351
      %v353 = vlaneseq
      %v354 = vshrl.u32 %v353, 7
      %v355 = vsub.s32 %v348, %v354
      %v356 = vrot.slane %v344, %v355
      %vm357 = vcmask 1041409
      %v358 = vsel %vm357, %v356, %v352
      %vm360 = vcmask 58368
      %361 = vst.msk [vmem:[#allocation11] sm:$0x3] %vm360, %v358
    $region49: #{tpu_custom_call.1} parent=1 // pred_fallthru
      _
    // Predicated region
    $region50: #{tpu_custom_call.1} parent=1 // pred_check
      _
    $region51: #{tpu_custom_call.1} parent=1 // pred_check_branch
      %363 = sbr.rel (0) target = $region53
    $region52: #{tpu_custom_call.1} parent=1 // pred_region
      %s365 = ssub.s32 32, 32
      %366 = vsyncadd [#allocation5], %s365
      %s368 = sshll.u32 [#allocation11], 4
      %s369 = int_to_ptr.vmem [resolvable:$true] %s368
      %371 = dma.vmem_to_hbm [thread:$0]  %s369, 32, %s6, [#allocation5]
    $region53: #{tpu_custom_call.1} parent=1 // pred_fallthru
      _
    // Predicated region
    $region54: #{tpu_custom_call.1} parent=1 // pred_check
      _
    $region55: #{tpu_custom_call.1} parent=1 // pred_check_branch
      %373 = sbr.rel (0) target = $region57
    $region56: #{tpu_custom_call.1} parent=1 // pred_region
      %374 = dma.done [#allocation5], 32
    $region57: #{tpu_custom_call.1} parent=1 // pred_fallthru
      _
    %375 = vsyncpa [#allocation4], 1
    %376 = vsyncpa [#allocation7], 1
    %377 = vsyncpa [#allocation10], 1
    %378 = vsyncpa [#allocation5], 1

</llo_original>
